<compile_context>
chip_gen: v7x
topology: tpu7x:2x2x1
jax: 0.10.0
libtpu: 0.0.40
codegen_flags: <defaults>
</compile_context>

<pallas_src>
import numpy as np
import jax
import jax.numpy as jnp
from jax import lax
from jax.experimental import pallas as pl
from jax.experimental.pallas import tpu as pltpu


_LANE_TILE = 512             # lane-axis tile target (multiple of 128)
_SUBLANE_TILE = 256          # sublane-axis tile target (multiple of 8)
_CHUNK_ROWS = 8              # in-kernel sublane chunk size
_MAX_IN_TILE_BYTES = 6 << 20  # per-input tile cap (keeps 2 in x 2 buf in v7x VMEM)

# Abramowitz & Stegun 4.4.46: acos(x) ~= sqrt(1-x) * P(x) on [0,1], |err|<=2e-8.
_ACOS_COEFFS = (1.5707963050, -0.2145988016, 0.0889789874, -0.0501743046,
                0.0308918810, -0.0170881256, 0.0066700901, -0.0012624911)


def _acos(x):
    """arccos(x) for x in [-1, 1] via minimax polynomial + reflection."""
    a = jnp.abs(x)
    p = jnp.float32(_ACOS_COEFFS[-1])
    for c in reversed(_ACOS_COEFFS[:-1]):
        p = p * a + jnp.float32(c)
    acos_abs = jnp.sqrt(jnp.maximum(1.0 - a, 0.0)) * p
    return jnp.where(x >= 0.0, acos_abs, jnp.float32(np.pi) - acos_abs)


# ----------------------------- Pallas kernel ------------------------------- #
def _mse_sam_kernel(t_ref, p_ref, sq_ref, sam_ref):
    # t_ref, p_ref: (C, TR, TL).  sq_ref, sam_ref: (1, 1) running accumulators
    # (output-resident across the last, "arbitrary" grid axis).
    C, TR, TL = t_ref.shape
    ch = _CHUNK_ROWS if TR % _CHUNK_ROWS == 0 else TR

    sq_vec = jnp.zeros((ch, TL), jnp.float32)
    sam_vec = jnp.zeros((ch, TL), jnp.float32)

    # Spatial-chunk-outer / channel-inner: dot/tt/pp/dd live in vregs for one
    # (ch, TL) chunk at a time instead of whole-tile f32 accumulators.
    for r0 in range(0, TR, ch):
        dot = jnp.zeros((ch, TL), jnp.float32)
        tt = jnp.zeros((ch, TL), jnp.float32)
        pp = jnp.zeros((ch, TL), jnp.float32)
        dd = jnp.zeros((ch, TL), jnp.float32)

        def accum(t, p, dot, tt, pp, dd):
            t = t.astype(jnp.float32)
            p = p.astype(jnp.float32)
            d = p - t
            return dot + t * p, tt + t * t, pp + p * p, dd + d * d

        if C <= 16:
            for c in range(C):  # small C: fully unrolled (LLO-visible)
                dot, tt, pp, dd = accum(t_ref[c, pl.ds(r0, ch), :],
                                        p_ref[c, pl.ds(r0, ch), :],
                                        dot, tt, pp, dd)
        else:
            # Hyperspectral-sized C: keep program size bounded.
            def body(c, carry):
                return accum(t_ref[c, pl.ds(r0, ch), :],
                             p_ref[c, pl.ds(r0, ch), :], *carry)
            dot, tt, pp, dd = lax.fori_loop(0, C, body, (dot, tt, pp, dd))

        # Reference epsilon semantics exactly: (sqrt(tt)+1e-8)*(sqrt(pp)+1e-8).
        # Exact divide on purpose: approx reciprocal error is amplified by
        # arccos near |cos| ~ 1 and breaks the rtol=1e-4 check.
        denom = (jnp.sqrt(tt) + 1e-8) * (jnp.sqrt(pp) + 1e-8)
        cosv = jnp.clip(dot / denom, -1.0, 1.0)
        sam_vec = sam_vec + _acos(cosv)
        sq_vec = sq_vec + dd

    @pl.when(pl.program_id(2) == 0)
    def _():
        sq_ref[...] = jnp.zeros_like(sq_ref)
        sam_ref[...] = jnp.zeros_like(sam_ref)

    sq_ref[...] += jnp.sum(sq_vec, keepdims=True)
    sam_ref[...] += jnp.sum(sam_vec, keepdims=True)


# ----------------------------- tiling helpers ------------------------------ #
def _pick_tile(dim, target, align):
    """Largest tile <= target, multiple of `align`, dividing `dim`; else full dim."""
    if dim <= target:
        return dim
    t = (target // align) * align
    while t >= align:
        if dim % t == 0:
            return t
        t -= align
    return dim


def _shrink_tile(dim, cur, align):
    t = cur - align
    while t >= align:
        if dim % t == 0:
            return t
        t -= align
    return None


def _spatial_layout(H, W):
    """Factor H*W into lane-dense (R, L) with L a multiple of 128 when possible."""
    HW = H * W
    best = None
    for mult in range(1, 33):
        L = 128 * mult
        if HW % L == 0 and (best is None or abs(L - _LANE_TILE) < abs(best - _LANE_TILE)):
            best = L
    if best is None:
        return H, W
    return HW // best, best


def _choose_tiles(C, R, L):
    TR = _pick_tile(R, _SUBLANE_TILE, 8)
    TL = _pick_tile(L, _LANE_TILE, 128)
    while C * TR * TL * 4 > _MAX_IN_TILE_BYTES:
        nt = _shrink_tile(R, TR, 8)
        if nt is not None:
            TR = nt
            continue
        nt = _shrink_tile(L, TL, 128)
        if nt is not None:
            TL = nt
            continue
        # TODO(synk): add a C-blocking ("arbitrary") grid axis with VMEM-scratch
        # accumulators for very large C that cannot fit a single tile.
        break
    return TR, TL


def _scale_loss(y_true, y_pred):
    """Returns (mse, sam) for one scale; all heavy reductions run in Pallas."""
    N, C, H, W = y_true.shape
    R, L = _spatial_layout(H, W)
    y_true = y_true.reshape(N, C, R, L)   # contiguous reshape, no data movement
    y_pred = y_pred.reshape(N, C, R, L)
    TR, TL = _choose_tiles(C, R, L)
    nr, nl = R // TR, L // TL

    in_tile = C * TR * TL * 4
    # 2 inputs x 2 pipeline buffers + headroom; clamp for v7x's 64 MiB VMEM.
    vmem_limit = int(min(max(4 * in_tile + (8 << 20), 32 << 20), 48 << 20))

    sq_part, sam_part = pl.pallas_call(
        _mse_sam_kernel,
        out_shape=(
            jax.ShapeDtypeStruct((N, nr, 1, 1), jnp.float32),  # sum (p-t)^2
            jax.ShapeDtypeStruct((N, nr, 1, 1), jnp.float32),  # sum acos(cos)
        ),
        grid=(N, nr, nl),
        in_specs=[
            pl.BlockSpec((None, C, TR, TL), lambda n, i, j: (n, 0, i, j)),
            pl.BlockSpec((None, C, TR, TL), lambda n, i, j: (n, 0, i, j)),
        ],
        out_specs=(
            pl.BlockSpec((None, None, 1, 1), lambda n, i, j: (n, i, 0, 0)),
            pl.BlockSpec((None, None, 1, 1), lambda n, i, j: (n, i, 0, 0)),
        ),
        compiler_params=pltpu.CompilerParams(
            dimension_semantics=("parallel", "parallel", "arbitrary"),
            vmem_limit_bytes=vmem_limit,
        ),
    )(y_true, y_pred)

    mse = jnp.sum(sq_part) / float(N * C * H * W)
    sam = jnp.sum(sam_part) / float(N * H * W)
    return mse, sam


# --------------------- bilinear downsample (2-tap lerp) --------------------- #
def _interp_params(in_size, scale):
    out_size = int(np.floor(in_size * scale))
    ratio = in_size / out_size
    dst = np.arange(out_size, dtype=np.float64)
    src = np.maximum((dst + 0.5) * ratio - 0.5, 0.0)
    i0 = np.minimum(np.floor(src).astype(np.int64), in_size - 1)
    i1 = np.minimum(i0 + 1, in_size - 1)
    lam = (src - i0).astype(np.float32)
    return (jnp.asarray(i0, dtype=jnp.int32),
            jnp.asarray(i1, dtype=jnp.int32),
            jnp.asarray(lam, dtype=jnp.float32))


def _bilinear_downsample(x, scale):
    """Matches F.interpolate(mode='bilinear', align_corners=False, no antialias).

    For the exact cases (scale 0.5 with even dims, 0.25 with dims % 4 == 0) the
    two taps have weight exactly 0.5, so the op reduces to strided-slice
    averaging (no gathers).  General shapes fall back to the 2-tap gather."""
    _, _, H, W = x.shape
    if scale == 0.5 and H % 2 == 0 and W % 2 == 0:
        x = (x[:, :, 0::2, :] + x[:, :, 1::2, :]) * 0.5
        x = (x[:, :, :, 0::2] + x[:, :, :, 1::2]) * 0.5
        return x
    if scale == 0.25 and H % 4 == 0 and W % 4 == 0:
        x = (x[:, :, 1::4, :] + x[:, :, 2::4, :]) * 0.5
        x = (x[:, :, :, 1::4] + x[:, :, :, 2::4]) * 0.5
        return x
    i0h, i1h, lh = _interp_params(H, scale)
    i0w, i1w, lw = _interp_params(W, scale)
    lh = lh[None, None, :, None]
    x = jnp.take(x, i0h, axis=2) * (1.0 - lh) + jnp.take(x, i1h, axis=2) * lh
    lw = lw[None, None, None, :]
    x = jnp.take(x, i0w, axis=3) * (1.0 - lw) + jnp.take(x, i1w, axis=3) * lw
    return x


# ------------------------------ public module ------------------------------ #
class MultiScaleLossPallas:
    def __init__(self, scales=(1, 0.5, 0.25), weight_mse=1.0, weight_sam=1.0):
        self.scales = tuple(scales)
        self.weight_mse = float(weight_mse)
        self.weight_sam = float(weight_sam)

    def __call__(self, y_true, y_pred):
        total = jnp.float32(0.0)
        for s in self.scales:
            if s < 1:
                # TODO(synk): fusing the strided downsample of all scales into a
                # single Pallas pass (one full-res HBM read total) would cut HBM
                # traffic a further ~2-3x; kept as separate strided-slice passes
                # here to stay bit-faithful to F.interpolate from full resolution.
                t_s = _bilinear_downsample(y_true, s)
                p_s = _bilinear_downsample(y_pred, s)
            else:
                t_s, p_s = y_true, y_pred
            mse, sam = _scale_loss(t_s, p_s)
            total = total + self.weight_mse * mse + self.weight_sam * sam
        return total


# ------------------------------ pure-JAX reference -------------------------- #
def _reference_loss(y_true, y_pred, scales=(1, 0.5, 0.25), wm=1.0, ws=1.0):
    total = jnp.float32(0.0)
    for s in scales:
        t = y_true if s >= 1 else _bilinear_downsample(y_true, s)
        p = y_pred if s >= 1 else _bilinear_downsample(y_pred, s)
        mse = jnp.mean((p - t) ** 2)
        N, C, H, W = t.shape
        tf = t.reshape(N, C, H * W)
        pf = p.reshape(N, C, H * W)
        dot = jnp.sum(tf * pf, axis=1)
        nt = jnp.sqrt(jnp.sum(tf * tf, axis=1)) + 1e-8
        npd = jnp.sqrt(jnp.sum(pf * pf, axis=1)) + 1e-8
        sam = jnp.mean(jnp.arccos(jnp.clip(dot / (nt * npd), -1.0, 1.0)))
        total = total + wm * mse + ws * sam
    return total


if __name__ == "__main__":
    key = jax.random.PRNGKey(0)
    k1, k2 = jax.random.split(key)
    # (N, C, H, W) — small shapes consistent with the module's NCHW contract.
    y_true = jax.random.uniform(k1, (2, 4, 16, 16), dtype=jnp.float32)
    y_pred = jax.random.uniform(k2, (2, 4, 16, 16), dtype=jnp.float32)

    loss_mod = MultiScaleLossPallas(scales=[1, 0.5, 0.25], weight_mse=1.0, weight_sam=1.0)
    loss_fn = jax.jit(loss_mod.__call__)

    out = loss_fn(y_true, y_pred)
    jax.block_until_ready(out)

    ref = _reference_loss(y_true, y_pred)
    assert np.allclose(np.asarray(out), np.asarray(ref), rtol=1e-4, atol=1e-5), \
        (float(out), float(ref))

    print("KERNEL_OK")
</pallas_src>

<mosaic_0001>
module attributes {stable_mosaic.version = 11 : i64} {
  func.func @_mse_sam_kernel(%arg0: i32, %arg1: i32, %arg2: i32, %arg3: memref<1x4x8x8xf32, #tpu.memory_space<vmem>>, %arg4: memref<1x4x8x8xf32, #tpu.memory_space<vmem>>, %arg5: memref<1x1x1x1xf32, #tpu.memory_space<vmem>>, %arg6: memref<1x1x1x1xf32, #tpu.memory_space<vmem>>) attributes {dimension_semantics = [#tpu.dimension_semantics<parallel>, #tpu.dimension_semantics<parallel>, #tpu.dimension_semantics<arbitrary>], iteration_bounds = array<i64: 2, 1, 1>, scalar_prefetch = 0 : i64, scratch_operands = 0 : i64, tpu.core_type = #tpu.core_type<tc>, window_params = [{transform_indices = @transform_0, window_bounds = array<i64: 1, 4, 8, 8>}, {transform_indices = @transform_1, window_bounds = array<i64: 1, 4, 8, 8>}, {transform_indices = @transform_2, window_bounds = array<i64: 1, 1, 1, 1>}, {transform_indices = @transform_3, window_bounds = array<i64: 1, 1, 1, 1>}]} {
    %cst = arith.constant 0.000000e+00 : f32
    %0 = vector.broadcast %cst : f32 to vector<8x8xf32>
    %cst_0 = arith.constant 0.000000e+00 : f32
    %1 = vector.broadcast %cst_0 : f32 to vector<8x8xf32>
    %cst_1 = arith.constant 0.000000e+00 : f32
    %2 = vector.broadcast %cst_1 : f32 to vector<8x8xf32>
    %cst_2 = arith.constant 0.000000e+00 : f32
    %3 = vector.broadcast %cst_2 : f32 to vector<8x8xf32>
    %cst_3 = arith.constant 0.000000e+00 : f32
    %4 = vector.broadcast %cst_3 : f32 to vector<8x8xf32>
    %cst_4 = arith.constant 0.000000e+00 : f32
    %5 = vector.broadcast %cst_4 : f32 to vector<8x8xf32>
    %c0 = arith.constant 0 : index
    %c0_5 = arith.constant 0 : index
    %c0_6 = arith.constant 0 : index
    %c0_7 = arith.constant 0 : index
    %6 = vector.load %arg3[%c0, %c0_5, %c0_6, %c0_7] : memref<1x4x8x8xf32, #tpu.memory_space<vmem>>, vector<1x1x8x8xf32>
    %7 = vector.shape_cast %6 : vector<1x1x8x8xf32> to vector<8x8xf32>
    %c0_8 = arith.constant 0 : index
    %c0_9 = arith.constant 0 : index
    %c0_10 = arith.constant 0 : index
    %c0_11 = arith.constant 0 : index
    %8 = vector.load %arg4[%c0_8, %c0_9, %c0_10, %c0_11] : memref<1x4x8x8xf32, #tpu.memory_space<vmem>>, vector<1x1x8x8xf32>
    %9 = vector.shape_cast %8 : vector<1x1x8x8xf32> to vector<8x8xf32>
    %10 = arith.subf %9, %7 : vector<8x8xf32>
    %11 = arith.mulf %7, %9 : vector<8x8xf32>
    %12 = arith.addf %2, %11 : vector<8x8xf32>
    %13 = arith.mulf %7, %7 : vector<8x8xf32>
    %14 = arith.addf %3, %13 : vector<8x8xf32>
    %15 = arith.mulf %9, %9 : vector<8x8xf32>
    %16 = arith.addf %4, %15 : vector<8x8xf32>
    %17 = arith.mulf %10, %10 : vector<8x8xf32>
    %18 = arith.addf %5, %17 : vector<8x8xf32>
    %c0_12 = arith.constant 0 : index
    %c1 = arith.constant 1 : index
    %c0_13 = arith.constant 0 : index
    %c0_14 = arith.constant 0 : index
    %19 = vector.load %arg3[%c0_12, %c1, %c0_13, %c0_14] : memref<1x4x8x8xf32, #tpu.memory_space<vmem>>, vector<1x1x8x8xf32>
    %20 = vector.shape_cast %19 : vector<1x1x8x8xf32> to vector<8x8xf32>
    %c0_15 = arith.constant 0 : index
    %c1_16 = arith.constant 1 : index
    %c0_17 = arith.constant 0 : index
    %c0_18 = arith.constant 0 : index
    %21 = vector.load %arg4[%c0_15, %c1_16, %c0_17, %c0_18] : memref<1x4x8x8xf32, #tpu.memory_space<vmem>>, vector<1x1x8x8xf32>
    %22 = vector.shape_cast %21 : vector<1x1x8x8xf32> to vector<8x8xf32>
    %23 = arith.subf %22, %20 : vector<8x8xf32>
    %24 = arith.mulf %20, %22 : vector<8x8xf32>
    %25 = arith.addf %12, %24 : vector<8x8xf32>
    %26 = arith.mulf %20, %20 : vector<8x8xf32>
    %27 = arith.addf %14, %26 : vector<8x8xf32>
    %28 = arith.mulf %22, %22 : vector<8x8xf32>
    %29 = arith.addf %16, %28 : vector<8x8xf32>
    %30 = arith.mulf %23, %23 : vector<8x8xf32>
    %31 = arith.addf %18, %30 : vector<8x8xf32>
    %c0_19 = arith.constant 0 : index
    %c2 = arith.constant 2 : index
    %c0_20 = arith.constant 0 : index
    %c0_21 = arith.constant 0 : index
    %32 = vector.load %arg3[%c0_19, %c2, %c0_20, %c0_21] : memref<1x4x8x8xf32, #tpu.memory_space<vmem>>, vector<1x1x8x8xf32>
    %33 = vector.shape_cast %32 : vector<1x1x8x8xf32> to vector<8x8xf32>
    %c0_22 = arith.constant 0 : index
    %c2_23 = arith.constant 2 : index
    %c0_24 = arith.constant 0 : index
    %c0_25 = arith.constant 0 : index
    %34 = vector.load %arg4[%c0_22, %c2_23, %c0_24, %c0_25] : memref<1x4x8x8xf32, #tpu.memory_space<vmem>>, vector<1x1x8x8xf32>
    %35 = vector.shape_cast %34 : vector<1x1x8x8xf32> to vector<8x8xf32>
    %36 = arith.subf %35, %33 : vector<8x8xf32>
    %37 = arith.mulf %33, %35 : vector<8x8xf32>
    %38 = arith.addf %25, %37 : vector<8x8xf32>
    %39 = arith.mulf %33, %33 : vector<8x8xf32>
    %40 = arith.addf %27, %39 : vector<8x8xf32>
    %41 = arith.mulf %35, %35 : vector<8x8xf32>
    %42 = arith.addf %29, %41 : vector<8x8xf32>
    %43 = arith.mulf %36, %36 : vector<8x8xf32>
    %44 = arith.addf %31, %43 : vector<8x8xf32>
    %c0_26 = arith.constant 0 : index
    %c3 = arith.constant 3 : index
    %c0_27 = arith.constant 0 : index
    %c0_28 = arith.constant 0 : index
    %45 = vector.load %arg3[%c0_26, %c3, %c0_27, %c0_28] : memref<1x4x8x8xf32, #tpu.memory_space<vmem>>, vector<1x1x8x8xf32>
    %46 = vector.shape_cast %45 : vector<1x1x8x8xf32> to vector<8x8xf32>
    %c0_29 = arith.constant 0 : index
    %c3_30 = arith.constant 3 : index
    %c0_31 = arith.constant 0 : index
    %c0_32 = arith.constant 0 : index
    %47 = vector.load %arg4[%c0_29, %c3_30, %c0_31, %c0_32] : memref<1x4x8x8xf32, #tpu.memory_space<vmem>>, vector<1x1x8x8xf32>
    %48 = vector.shape_cast %47 : vector<1x1x8x8xf32> to vector<8x8xf32>
    %49 = arith.subf %48, %46 : vector<8x8xf32>
    %50 = arith.mulf %46, %48 : vector<8x8xf32>
    %51 = arith.addf %38, %50 : vector<8x8xf32>
    %52 = arith.mulf %46, %46 : vector<8x8xf32>
    %53 = arith.addf %40, %52 : vector<8x8xf32>
    %54 = arith.mulf %48, %48 : vector<8x8xf32>
    %55 = arith.addf %42, %54 : vector<8x8xf32>
    %56 = arith.mulf %49, %49 : vector<8x8xf32>
    %57 = arith.addf %44, %56 : vector<8x8xf32>
    %58 = math.sqrt %53 : vector<8x8xf32>
    %cst_33 = arith.constant 9.99999993E-9 : f32
    %59 = vector.broadcast %cst_33 : f32 to vector<8x8xf32>
    %60 = arith.addf %58, %59 : vector<8x8xf32>
    %61 = math.sqrt %55 : vector<8x8xf32>
    %cst_34 = arith.constant 9.99999993E-9 : f32
    %62 = vector.broadcast %cst_34 : f32 to vector<8x8xf32>
    %63 = arith.addf %61, %62 : vector<8x8xf32>
    %64 = arith.mulf %60, %63 : vector<8x8xf32>
    %65 = arith.divf %51, %64 : vector<8x8xf32>
    %cst_35 = arith.constant -1.000000e+00 : f32
    %cst_36 = arith.constant 1.000000e+00 : f32
    %66 = vector.broadcast %cst_35 : f32 to vector<8x8xf32>
    %67 = arith.maximumf %66, %65 : vector<8x8xf32>
    %68 = vector.broadcast %cst_36 : f32 to vector<8x8xf32>
    %69 = arith.minimumf %68, %67 : vector<8x8xf32>
    %70 = math.absf %69 : vector<8x8xf32>
    %cst_37 = arith.constant -0.0012624911 : f32
    %71 = vector.broadcast %cst_37 : f32 to vector<8x8xf32>
    %72 = arith.mulf %71, %70 : vector<8x8xf32>
    %cst_38 = arith.constant 6.670090e-03 : f32
    %73 = vector.broadcast %cst_38 : f32 to vector<8x8xf32>
    %74 = arith.addf %72, %73 : vector<8x8xf32>
    %75 = arith.mulf %74, %70 : vector<8x8xf32>
    %cst_39 = arith.constant -0.0170881264 : f32
    %76 = vector.broadcast %cst_39 : f32 to vector<8x8xf32>
    %77 = arith.addf %75, %76 : vector<8x8xf32>
    %78 = arith.mulf %77, %70 : vector<8x8xf32>
    %cst_40 = arith.constant 0.0308918804 : f32
    %79 = vector.broadcast %cst_40 : f32 to vector<8x8xf32>
    %80 = arith.addf %78, %79 : vector<8x8xf32>
    %81 = arith.mulf %80, %70 : vector<8x8xf32>
    %cst_41 = arith.constant -0.0501743034 : f32
    %82 = vector.broadcast %cst_41 : f32 to vector<8x8xf32>
    %83 = arith.addf %81, %82 : vector<8x8xf32>
    %84 = arith.mulf %83, %70 : vector<8x8xf32>
    %cst_42 = arith.constant 0.0889789909 : f32
    %85 = vector.broadcast %cst_42 : f32 to vector<8x8xf32>
    %86 = arith.addf %84, %85 : vector<8x8xf32>
    %87 = arith.mulf %86, %70 : vector<8x8xf32>
    %cst_43 = arith.constant -0.214598805 : f32
    %88 = vector.broadcast %cst_43 : f32 to vector<8x8xf32>
    %89 = arith.addf %87, %88 : vector<8x8xf32>
    %90 = arith.mulf %89, %70 : vector<8x8xf32>
    %cst_44 = arith.constant 1.57079625 : f32
    %91 = vector.broadcast %cst_44 : f32 to vector<8x8xf32>
    %92 = arith.addf %90, %91 : vector<8x8xf32>
    %cst_45 = arith.constant 1.000000e+00 : f32
    %93 = vector.broadcast %cst_45 : f32 to vector<8x8xf32>
    %94 = arith.subf %93, %70 : vector<8x8xf32>
    %cst_46 = arith.constant 0.000000e+00 : f32
    %95 = vector.broadcast %cst_46 : f32 to vector<8x8xf32>
    %96 = arith.maximumf %94, %95 : vector<8x8xf32>
    %97 = math.sqrt %96 : vector<8x8xf32>
    %98 = arith.mulf %97, %92 : vector<8x8xf32>
    %cst_47 = arith.constant 0.000000e+00 : f32
    %99 = vector.broadcast %cst_47 : f32 to vector<8x8xf32>
    %100 = arith.cmpf oge, %69, %99 : vector<8x8xf32>
    %cst_48 = arith.constant 3.14159274 : f32
    %101 = vector.broadcast %cst_48 : f32 to vector<8x8xf32>
    %102 = arith.subf %101, %98 : vector<8x8xf32>
    %103 = arith.select %100, %98, %102 : vector<8x8xi1>, vector<8x8xf32>
    %104 = arith.addf %1, %103 : vector<8x8xf32>
    %105 = arith.addf %0, %57 : vector<8x8xf32>
    %c0_i32 = arith.constant 0 : i32
    %106 = arith.cmpi eq, %arg2, %c0_i32 : i32
    %107 = arith.extui %106 : i1 to i32
    %c0_i32_49 = arith.constant 0 : i32
    %108 = arith.cmpi ne, %107, %c0_i32_49 : i32
    scf.if %108 {
      %cst_68 = arith.constant 0.000000e+00 : f32
      %131 = vector.broadcast %cst_68 : f32 to vector<1x1xf32>
      %c0_69 = arith.constant 0 : index
      %c0_70 = arith.constant 0 : index
      %c0_71 = arith.constant 0 : index
      %c0_72 = arith.constant 0 : index
      %132 = vector.load %arg5[%c0_69, %c0_70, %c0_71, %c0_72] : memref<1x1x1x1xf32, #tpu.memory_space<vmem>>, vector<1x1x1x1xf32>
      %133 = vector.shape_cast %132 : vector<1x1x1x1xf32> to vector<1x1xf32>
      %134 = vector.shape_cast %131 : vector<1x1xf32> to vector<1x1x1x1xf32>
      tpu.vector_store %arg5[%c0_69, %c0_70, %c0_71, %c0_72], %134 {strides = array<i32>} : memref<1x1x1x1xf32, #tpu.memory_space<vmem>>, vector<1x1x1x1xf32>,
      %cst_73 = arith.constant 0.000000e+00 : f32
      %135 = vector.broadcast %cst_73 : f32 to vector<1x1xf32>
      %c0_74 = arith.constant 0 : index
      %c0_75 = arith.constant 0 : index
      %c0_76 = arith.constant 0 : index
      %c0_77 = arith.constant 0 : index
      %136 = vector.load %arg6[%c0_74, %c0_75, %c0_76, %c0_77] : memref<1x1x1x1xf32, #tpu.memory_space<vmem>>, vector<1x1x1x1xf32>
      %137 = vector.shape_cast %136 : vector<1x1x1x1xf32> to vector<1x1xf32>
      %138 = vector.shape_cast %135 : vector<1x1xf32> to vector<1x1x1x1xf32>
      tpu.vector_store %arg6[%c0_74, %c0_75, %c0_76, %c0_77], %138 {strides = array<i32>} : memref<1x1x1x1xf32, #tpu.memory_space<vmem>>, vector<1x1x1x1xf32>,
    } else {
    }
    %c0_50 = arith.constant 0 : index
    %c0_51 = arith.constant 0 : index
    %c0_52 = arith.constant 0 : index
    %c0_53 = arith.constant 0 : index
    %109 = vector.load %arg5[%c0_50, %c0_51, %c0_52, %c0_53] : memref<1x1x1x1xf32, #tpu.memory_space<vmem>>, vector<1x1x1x1xf32>
    %110 = vector.shape_cast %109 : vector<1x1x1x1xf32> to vector<1x1xf32>
    %111 = vector.shape_cast %105 : vector<8x8xf32> to vector<1x8x8xf32>
    %cst_54 = arith.constant dense<0.000000e+00> : vector<1xf32>
    %112 = vector.multi_reduction <add>, %111, %cst_54 [1, 2] : vector<1x8x8xf32> to vector<1xf32>
    %113 = vector.shape_cast %112 : vector<1xf32> to vector<1x1x1xf32>
    %114 = vector.extract %113[0, 0, 0] : f32 from vector<1x1x1xf32>
    %115 = vector.broadcast %114 : f32 to vector<1x1xf32>
    %116 = arith.addf %110, %115 : vector<1x1xf32>
    %c0_55 = arith.constant 0 : index
    %c0_56 = arith.constant 0 : index
    %c0_57 = arith.constant 0 : index
    %c0_58 = arith.constant 0 : index
    %117 = vector.load %arg5[%c0_55, %c0_56, %c0_57, %c0_58] : memref<1x1x1x1xf32, #tpu.memory_space<vmem>>, vector<1x1x1x1xf32>
    %118 = vector.shape_cast %117 : vector<1x1x1x1xf32> to vector<1x1xf32>
    %119 = vector.shape_cast %116 : vector<1x1xf32> to vector<1x1x1x1xf32>
    tpu.vector_store %arg5[%c0_55, %c0_56, %c0_57, %c0_58], %119 {strides = array<i32>} : memref<1x1x1x1xf32, #tpu.memory_space<vmem>>, vector<1x1x1x1xf32>,
    %c0_59 = arith.constant 0 : index
    %c0_60 = arith.constant 0 : index
    %c0_61 = arith.constant 0 : index
    %c0_62 = arith.constant 0 : index
    %120 = vector.load %arg6[%c0_59, %c0_60, %c0_61, %c0_62] : memref<1x1x1x1xf32, #tpu.memory_space<vmem>>, vector<1x1x1x1xf32>
    %121 = vector.shape_cast %120 : vector<1x1x1x1xf32> to vector<1x1xf32>
    %122 = vector.shape_cast %104 : vector<8x8xf32> to vector<1x8x8xf32>
    %cst_63 = arith.constant dense<0.000000e+00> : vector<1xf32>
    %123 = vector.multi_reduction <add>, %122, %cst_63 [1, 2] : vector<1x8x8xf32> to vector<1xf32>
    %124 = vector.shape_cast %123 : vector<1xf32> to vector<1x1x1xf32>
    %125 = vector.extract %124[0, 0, 0] : f32 from vector<1x1x1xf32>
    %126 = vector.broadcast %125 : f32 to vector<1x1xf32>
    %127 = arith.addf %121, %126 : vector<1x1xf32>
    %c0_64 = arith.constant 0 : index
    %c0_65 = arith.constant 0 : index
    %c0_66 = arith.constant 0 : index
    %c0_67 = arith.constant 0 : index
    %128 = vector.load %arg6[%c0_64, %c0_65, %c0_66, %c0_67] : memref<1x1x1x1xf32, #tpu.memory_space<vmem>>, vector<1x1x1x1xf32>
    %129 = vector.shape_cast %128 : vector<1x1x1x1xf32> to vector<1x1xf32>
    %130 = vector.shape_cast %127 : vector<1x1xf32> to vector<1x1x1x1xf32>
    tpu.vector_store %arg6[%c0_64, %c0_65, %c0_66, %c0_67], %130 {strides = array<i32>} : memref<1x1x1x1xf32, #tpu.memory_space<vmem>>, vector<1x1x1x1xf32>,
    return
  }
  func.func @transform_0(%arg0: i32, %arg1: i32, %arg2: i32) -> (i32, i32, i32, i32) {
    %c0_i32 = arith.constant 0 : i32
    %c0_i32_0 = arith.constant 0 : i32
    return %arg0, %c0_i32, %arg1, %arg2 : i32, i32, i32, i32
  }
  func.func @transform_1(%arg0: i32, %arg1: i32, %arg2: i32) -> (i32, i32, i32, i32) {
    %c0_i32 = arith.constant 0 : i32
    %c0_i32_0 = arith.constant 0 : i32
    return %arg0, %c0_i32, %arg1, %arg2 : i32, i32, i32, i32
  }
  func.func @transform_2(%arg0: i32, %arg1: i32, %arg2: i32) -> (i32, i32, i32, i32) {
    %c0_i32 = arith.constant 0 : i32
    %c0_i32_0 = arith.constant 0 : i32
    %c0_i32_1 = arith.constant 0 : i32
    return %arg0, %arg1, %c0_i32, %c0_i32_0 : i32, i32, i32, i32
  }
  func.func @transform_3(%arg0: i32, %arg1: i32, %arg2: i32) -> (i32, i32, i32, i32) {
    %c0_i32 = arith.constant 0 : i32
    %c0_i32_0 = arith.constant 0 : i32
    %c0_i32_1 = arith.constant 0 : i32
    return %arg0, %arg1, %c0_i32, %c0_i32_0 : i32, i32, i32, i32
  }
}

module attributes {stable_mosaic.version = 11 : i64} {
  func.func @_mse_sam_kernel(%arg0: i32, %arg1: i32, %arg2: i32, %arg3: memref<1x4x1x256xf32, #tpu.memory_space<vmem>>, %arg4: memref<1x4x1x256xf32, #tpu.memory_space<vmem>>, %arg5: memref<1x1x1x1xf32, #tpu.memory_space<vmem>>, %arg6: memref<1x1x1x1xf32, #tpu.memory_space<vmem>>) attributes {dimension_semantics = [#tpu.dimension_semantics<parallel>, #tpu.dimension_semantics<parallel>, #tpu.dimension_semantics<arbitrary>], iteration_bounds = array<i64: 2, 1, 1>, scalar_prefetch = 0 : i64, scratch_operands = 0 : i64, tpu.core_type = #tpu.core_type<tc>, window_params = [{transform_indices = @transform_0, window_bounds = array<i64: 1, 4, 1, 256>}, {transform_indices = @transform_1, window_bounds = array<i64: 1, 4, 1, 256>}, {transform_indices = @transform_2, window_bounds = array<i64: 1, 1, 1, 1>}, {transform_indices = @transform_3, window_bounds = array<i64: 1, 1, 1, 1>}]} {
    %cst = arith.constant 0.000000e+00 : f32
    %0 = vector.broadcast %cst : f32 to vector<1x256xf32>
    %cst_0 = arith.constant 0.000000e+00 : f32
    %1 = vector.broadcast %cst_0 : f32 to vector<1x256xf32>
    %cst_1 = arith.constant 0.000000e+00 : f32
    %2 = vector.broadcast %cst_1 : f32 to vector<1x256xf32>
    %cst_2 = arith.constant 0.000000e+00 : f32
    %3 = vector.broadcast %cst_2 : f32 to vector<1x256xf32>
    %cst_3 = arith.constant 0.000000e+00 : f32
    %4 = vector.broadcast %cst_3 : f32 to vector<1x256xf32>
    %cst_4 = arith.constant 0.000000e+00 : f32
    %5 = vector.broadcast %cst_4 : f32 to vector<1x256xf32>
    %c0 = arith.constant 0 : index
    %c0_5 = arith.constant 0 : index
    %c0_6 = arith.constant 0 : index
    %c0_7 = arith.constant 0 : index
    %6 = vector.load %arg3[%c0, %c0_5, %c0_6, %c0_7] : memref<1x4x1x256xf32, #tpu.memory_space<vmem>>, vector<1x1x1x256xf32>
    %7 = vector.shape_cast %6 : vector<1x1x1x256xf32> to vector<1x256xf32>
    %c0_8 = arith.constant 0 : index
    %c0_9 = arith.constant 0 : index
    %c0_10 = arith.constant 0 : index
    %c0_11 = arith.constant 0 : index
    %8 = vector.load %arg4[%c0_8, %c0_9, %c0_10, %c0_11] : memref<1x4x1x256xf32, #tpu.memory_space<vmem>>, vector<1x1x1x256xf32>
    %9 = vector.shape_cast %8 : vector<1x1x1x256xf32> to vector<1x256xf32>
    %10 = arith.subf %9, %7 : vector<1x256xf32>
    %11 = arith.mulf %7, %9 : vector<1x256xf32>
    %12 = arith.addf %2, %11 : vector<1x256xf32>
    %13 = arith.mulf %7, %7 : vector<1x256xf32>
    %14 = arith.addf %3, %13 : vector<1x256xf32>
    %15 = arith.mulf %9, %9 : vector<1x256xf32>
    %16 = arith.addf %4, %15 : vector<1x256xf32>
    %17 = arith.mulf %10, %10 : vector<1x256xf32>
    %18 = arith.addf %5, %17 : vector<1x256xf32>
    %c0_12 = arith.constant 0 : index
    %c1 = arith.constant 1 : index
    %c0_13 = arith.constant 0 : index
    %c0_14 = arith.constant 0 : index
    %19 = vector.load %arg3[%c0_12, %c1, %c0_13, %c0_14] : memref<1x4x1x256xf32, #tpu.memory_space<vmem>>, vector<1x1x1x256xf32>
    %20 = vector.shape_cast %19 : vector<1x1x1x256xf32> to vector<1x256xf32>
    %c0_15 = arith.constant 0 : index
    %c1_16 = arith.constant 1 : index
    %c0_17 = arith.constant 0 : index
    %c0_18 = arith.constant 0 : index
    %21 = vector.load %arg4[%c0_15, %c1_16, %c0_17, %c0_18] : memref<1x4x1x256xf32, #tpu.memory_space<vmem>>, vector<1x1x1x256xf32>
    %22 = vector.shape_cast %21 : vector<1x1x1x256xf32> to vector<1x256xf32>
    %23 = arith.subf %22, %20 : vector<1x256xf32>
    %24 = arith.mulf %20, %22 : vector<1x256xf32>
    %25 = arith.addf %12, %24 : vector<1x256xf32>
    %26 = arith.mulf %20, %20 : vector<1x256xf32>
    %27 = arith.addf %14, %26 : vector<1x256xf32>
    %28 = arith.mulf %22, %22 : vector<1x256xf32>
    %29 = arith.addf %16, %28 : vector<1x256xf32>
    %30 = arith.mulf %23, %23 : vector<1x256xf32>
    %31 = arith.addf %18, %30 : vector<1x256xf32>
    %c0_19 = arith.constant 0 : index
    %c2 = arith.constant 2 : index
    %c0_20 = arith.constant 0 : index
    %c0_21 = arith.constant 0 : index
    %32 = vector.load %arg3[%c0_19, %c2, %c0_20, %c0_21] : memref<1x4x1x256xf32, #tpu.memory_space<vmem>>, vector<1x1x1x256xf32>
    %33 = vector.shape_cast %32 : vector<1x1x1x256xf32> to vector<1x256xf32>
    %c0_22 = arith.constant 0 : index
    %c2_23 = arith.constant 2 : index
    %c0_24 = arith.constant 0 : index
    %c0_25 = arith.constant 0 : index
    %34 = vector.load %arg4[%c0_22, %c2_23, %c0_24, %c0_25] : memref<1x4x1x256xf32, #tpu.memory_space<vmem>>, vector<1x1x1x256xf32>
    %35 = vector.shape_cast %34 : vector<1x1x1x256xf32> to vector<1x256xf32>
    %36 = arith.subf %35, %33 : vector<1x256xf32>
    %37 = arith.mulf %33, %35 : vector<1x256xf32>
    %38 = arith.addf %25, %37 : vector<1x256xf32>
    %39 = arith.mulf %33, %33 : vector<1x256xf32>
    %40 = arith.addf %27, %39 : vector<1x256xf32>
    %41 = arith.mulf %35, %35 : vector<1x256xf32>
    %42 = arith.addf %29, %41 : vector<1x256xf32>
    %43 = arith.mulf %36, %36 : vector<1x256xf32>
    %44 = arith.addf %31, %43 : vector<1x256xf32>
    %c0_26 = arith.constant 0 : index
    %c3 = arith.constant 3 : index
    %c0_27 = arith.constant 0 : index
    %c0_28 = arith.constant 0 : index
    %45 = vector.load %arg3[%c0_26, %c3, %c0_27, %c0_28] : memref<1x4x1x256xf32, #tpu.memory_space<vmem>>, vector<1x1x1x256xf32>
    %46 = vector.shape_cast %45 : vector<1x1x1x256xf32> to vector<1x256xf32>
    %c0_29 = arith.constant 0 : index
    %c3_30 = arith.constant 3 : index
    %c0_31 = arith.constant 0 : index
    %c0_32 = arith.constant 0 : index
    %47 = vector.load %arg4[%c0_29, %c3_30, %c0_31, %c0_32] : memref<1x4x1x256xf32, #tpu.memory_space<vmem>>, vector<1x1x1x256xf32>
    %48 = vector.shape_cast %47 : vector<1x1x1x256xf32> to vector<1x256xf32>
    %49 = arith.subf %48, %46 : vector<1x256xf32>
    %50 = arith.mulf %46, %48 : vector<1x256xf32>
    %51 = arith.addf %38, %50 : vector<1x256xf32>
    %52 = arith.mulf %46, %46 : vector<1x256xf32>
    %53 = arith.addf %40, %52 : vector<1x256xf32>
    %54 = arith.mulf %48, %48 : vector<1x256xf32>
    %55 = arith.addf %42, %54 : vector<1x256xf32>
    %56 = arith.mulf %49, %49 : vector<1x256xf32>
    %57 = arith.addf %44, %56 : vector<1x256xf32>
    %58 = math.sqrt %53 : vector<1x256xf32>
    %cst_33 = arith.constant 9.99999993E-9 : f32
    %59 = vector.broadcast %cst_33 : f32 to vector<1x256xf32>
    %60 = arith.addf %58, %59 : vector<1x256xf32>
    %61 = math.sqrt %55 : vector<1x256xf32>
    %cst_34 = arith.constant 9.99999993E-9 : f32
    %62 = vector.broadcast %cst_34 : f32 to vector<1x256xf32>
    %63 = arith.addf %61, %62 : vector<1x256xf32>
    %64 = arith.mulf %60, %63 : vector<1x256xf32>
    %65 = arith.divf %51, %64 : vector<1x256xf32>
    %cst_35 = arith.constant -1.000000e+00 : f32
    %cst_36 = arith.constant 1.000000e+00 : f32
    %66 = vector.broadcast %cst_35 : f32 to vector<1x256xf32>
    %67 = arith.maximumf %66, %65 : vector<1x256xf32>
    %68 = vector.broadcast %cst_36 : f32 to vector<1x256xf32>
    %69 = arith.minimumf %68, %67 : vector<1x256xf32>
    %70 = math.absf %69 : vector<1x256xf32>
    %cst_37 = arith.constant -0.0012624911 : f32
    %71 = vector.broadcast %cst_37 : f32 to vector<1x256xf32>
    %72 = arith.mulf %71, %70 : vector<1x256xf32>
    %cst_38 = arith.constant 6.670090e-03 : f32
    %73 = vector.broadcast %cst_38 : f32 to vector<1x256xf32>
    %74 = arith.addf %72, %73 : vector<1x256xf32>
    %75 = arith.mulf %74, %70 : vector<1x256xf32>
    %cst_39 = arith.constant -0.0170881264 : f32
    %76 = vector.broadcast %cst_39 : f32 to vector<1x256xf32>
    %77 = arith.addf %75, %76 : vector<1x256xf32>
    %78 = arith.mulf %77, %70 : vector<1x256xf32>
    %cst_40 = arith.constant 0.0308918804 : f32
    %79 = vector.broadcast %cst_40 : f32 to vector<1x256xf32>
    %80 = arith.addf %78, %79 : vector<1x256xf32>
    %81 = arith.mulf %80, %70 : vector<1x256xf32>
    %cst_41 = arith.constant -0.0501743034 : f32
    %82 = vector.broadcast %cst_41 : f32 to vector<1x256xf32>
    %83 = arith.addf %81, %82 : vector<1x256xf32>
    %84 = arith.mulf %83, %70 : vector<1x256xf32>
    %cst_42 = arith.constant 0.0889789909 : f32
    %85 = vector.broadcast %cst_42 : f32 to vector<1x256xf32>
    %86 = arith.addf %84, %85 : vector<1x256xf32>
    %87 = arith.mulf %86, %70 : vector<1x256xf32>
    %cst_43 = arith.constant -0.214598805 : f32
    %88 = vector.broadcast %cst_43 : f32 to vector<1x256xf32>
    %89 = arith.addf %87, %88 : vector<1x256xf32>
    %90 = arith.mulf %89, %70 : vector<1x256xf32>
    %cst_44 = arith.constant 1.57079625 : f32
    %91 = vector.broadcast %cst_44 : f32 to vector<1x256xf32>
    %92 = arith.addf %90, %91 : vector<1x256xf32>
    %cst_45 = arith.constant 1.000000e+00 : f32
    %93 = vector.broadcast %cst_45 : f32 to vector<1x256xf32>
    %94 = arith.subf %93, %70 : vector<1x256xf32>
    %cst_46 = arith.constant 0.000000e+00 : f32
    %95 = vector.broadcast %cst_46 : f32 to vector<1x256xf32>
    %96 = arith.maximumf %94, %95 : vector<1x256xf32>
    %97 = math.sqrt %96 : vector<1x256xf32>
    %98 = arith.mulf %97, %92 : vector<1x256xf32>
    %cst_47 = arith.constant 0.000000e+00 : f32
    %99 = vector.broadcast %cst_47 : f32 to vector<1x256xf32>
    %100 = arith.cmpf oge, %69, %99 : vector<1x256xf32>
    %cst_48 = arith.constant 3.14159274 : f32
    %101 = vector.broadcast %cst_48 : f32 to vector<1x256xf32>
    %102 = arith.subf %101, %98 : vector<1x256xf32>
    %103 = arith.select %100, %98, %102 : vector<1x256xi1>, vector<1x256xf32>
    %104 = arith.addf %1, %103 : vector<1x256xf32>
    %105 = arith.addf %0, %57 : vector<1x256xf32>
    %c0_i32 = arith.constant 0 : i32
    %106 = arith.cmpi eq, %arg2, %c0_i32 : i32
    %107 = arith.extui %106 : i1 to i32
    %c0_i32_49 = arith.constant 0 : i32
    %108 = arith.cmpi ne, %107, %c0_i32_49 : i32
    scf.if %108 {
      %cst_68 = arith.constant 0.000000e+00 : f32
      %131 = vector.broadcast %cst_68 : f32 to vector<1x1xf32>
      %c0_69 = arith.constant 0 : index
      %c0_70 = arith.constant 0 : index
      %c0_71 = arith.constant 0 : index
      %c0_72 = arith.constant 0 : index
      %132 = vector.load %arg5[%c0_69, %c0_70, %c0_71, %c0_72] : memref<1x1x1x1xf32, #tpu.memory_space<vmem>>, vector<1x1x1x1xf32>
      %133 = vector.shape_cast %132 : vector<1x1x1x1xf32> to vector<1x1xf32>
      %134 = vector.shape_cast %131 : vector<1x1xf32> to vector<1x1x1x1xf32>
      tpu.vector_store %arg5[%c0_69, %c0_70, %c0_71, %c0_72], %134 {strides = array<i32>} : memref<1x1x1x1xf32, #tpu.memory_space<vmem>>, vector<1x1x1x1xf32>,
      %cst_73 = arith.constant 0.000000e+00 : f32
      %135 = vector.broadcast %cst_73 : f32 to vector<1x1xf32>
      %c0_74 = arith.constant 0 : index
      %c0_75 = arith.constant 0 : index
      %c0_76 = arith.constant 0 : index
      %c0_77 = arith.constant 0 : index
      %136 = vector.load %arg6[%c0_74, %c0_75, %c0_76, %c0_77] : memref<1x1x1x1xf32, #tpu.memory_space<vmem>>, vector<1x1x1x1xf32>
      %137 = vector.shape_cast %136 : vector<1x1x1x1xf32> to vector<1x1xf32>
      %138 = vector.shape_cast %135 : vector<1x1xf32> to vector<1x1x1x1xf32>
      tpu.vector_store %arg6[%c0_74, %c0_75, %c0_76, %c0_77], %138 {strides = array<i32>} : memref<1x1x1x1xf32, #tpu.memory_space<vmem>>, vector<1x1x1x1xf32>,
    } else {
    }
    %c0_50 = arith.constant 0 : index
    %c0_51 = arith.constant 0 : index
    %c0_52 = arith.constant 0 : index
    %c0_53 = arith.constant 0 : index
    %109 = vector.load %arg5[%c0_50, %c0_51, %c0_52, %c0_53] : memref<1x1x1x1xf32, #tpu.memory_space<vmem>>, vector<1x1x1x1xf32>
    %110 = vector.shape_cast %109 : vector<1x1x1x1xf32> to vector<1x1xf32>
    %111 = vector.shape_cast %105 : vector<1x256xf32> to vector<1x1x256xf32>
    %cst_54 = arith.constant dense<0.000000e+00> : vector<1xf32>
    %112 = vector.multi_reduction <add>, %111, %cst_54 [1, 2] : vector<1x1x256xf32> to vector<1xf32>
    %113 = vector.shape_cast %112 : vector<1xf32> to vector<1x1x1xf32>
    %114 = vector.extract %113[0, 0, 0] : f32 from vector<1x1x1xf32>
    %115 = vector.broadcast %114 : f32 to vector<1x1xf32>
    %116 = arith.addf %110, %115 : vector<1x1xf32>
    %c0_55 = arith.constant 0 : index
    %c0_56 = arith.constant 0 : index
    %c0_57 = arith.constant 0 : index
    %c0_58 = arith.constant 0 : index
    %117 = vector.load %arg5[%c0_55, %c0_56, %c0_57, %c0_58] : memref<1x1x1x1xf32, #tpu.memory_space<vmem>>, vector<1x1x1x1xf32>
    %118 = vector.shape_cast %117 : vector<1x1x1x1xf32> to vector<1x1xf32>
    %119 = vector.shape_cast %116 : vector<1x1xf32> to vector<1x1x1x1xf32>
    tpu.vector_store %arg5[%c0_55, %c0_56, %c0_57, %c0_58], %119 {strides = array<i32>} : memref<1x1x1x1xf32, #tpu.memory_space<vmem>>, vector<1x1x1x1xf32>,
    %c0_59 = arith.constant 0 : index
    %c0_60 = arith.constant 0 : index
    %c0_61 = arith.constant 0 : index
    %c0_62 = arith.constant 0 : index
    %120 = vector.load %arg6[%c0_59, %c0_60, %c0_61, %c0_62] : memref<1x1x1x1xf32, #tpu.memory_space<vmem>>, vector<1x1x1x1xf32>
    %121 = vector.shape_cast %120 : vector<1x1x1x1xf32> to vector<1x1xf32>
    %122 = vector.shape_cast %104 : vector<1x256xf32> to vector<1x1x256xf32>
    %cst_63 = arith.constant dense<0.000000e+00> : vector<1xf32>
    %123 = vector.multi_reduction <add>, %122, %cst_63 [1, 2] : vector<1x1x256xf32> to vector<1xf32>
    %124 = vector.shape_cast %123 : vector<1xf32> to vector<1x1x1xf32>
    %125 = vector.extract %124[0, 0, 0] : f32 from vector<1x1x1xf32>
    %126 = vector.broadcast %125 : f32 to vector<1x1xf32>
    %127 = arith.addf %121, %126 : vector<1x1xf32>
    %c0_64 = arith.constant 0 : index
    %c0_65 = arith.constant 0 : index
    %c0_66 = arith.constant 0 : index
    %c0_67 = arith.constant 0 : index
    %128 = vector.load %arg6[%c0_64, %c0_65, %c0_66, %c0_67] : memref<1x1x1x1xf32, #tpu.memory_space<vmem>>, vector<1x1x1x1xf32>
    %129 = vector.shape_cast %128 : vector<1x1x1x1xf32> to vector<1x1xf32>
    %130 = vector.shape_cast %127 : vector<1x1xf32> to vector<1x1x1x1xf32>
    tpu.vector_store %arg6[%c0_64, %c0_65, %c0_66, %c0_67], %130 {strides = array<i32>} : memref<1x1x1x1xf32, #tpu.memory_space<vmem>>, vector<1x1x1x1xf32>,
    return
  }
  func.func @transform_0(%arg0: i32, %arg1: i32, %arg2: i32) -> (i32, i32, i32, i32) {
    %c0_i32 = arith.constant 0 : i32
    %c0_i32_0 = arith.constant 0 : i32
    return %arg0, %c0_i32, %arg1, %arg2 : i32, i32, i32, i32
  }
  func.func @transform_1(%arg0: i32, %arg1: i32, %arg2: i32) -> (i32, i32, i32, i32) {
    %c0_i32 = arith.constant 0 : i32
    %c0_i32_0 = arith.constant 0 : i32
    return %arg0, %c0_i32, %arg1, %arg2 : i32, i32, i32, i32
  }
  func.func @transform_2(%arg0: i32, %arg1: i32, %arg2: i32) -> (i32, i32, i32, i32) {
    %c0_i32 = arith.constant 0 : i32
    %c0_i32_0 = arith.constant 0 : i32
    %c0_i32_1 = arith.constant 0 : i32
    return %arg0, %arg1, %c0_i32, %c0_i32_0 : i32, i32, i32, i32
  }
  func.func @transform_3(%arg0: i32, %arg1: i32, %arg2: i32) -> (i32, i32, i32, i32) {
    %c0_i32 = arith.constant 0 : i32
    %c0_i32_0 = arith.constant 0 : i32
    %c0_i32_1 = arith.constant 0 : i32
    return %arg0, %arg1, %c0_i32, %c0_i32_0 : i32, i32, i32, i32
  }
}

module attributes {stable_mosaic.version = 11 : i64} {
  func.func @_mse_sam_kernel(%arg0: i32, %arg1: i32, %arg2: i32, %arg3: memref<1x4x4x4xf32, #tpu.memory_space<vmem>>, %arg4: memref<1x4x4x4xf32, #tpu.memory_space<vmem>>, %arg5: memref<1x1x1x1xf32, #tpu.memory_space<vmem>>, %arg6: memref<1x1x1x1xf32, #tpu.memory_space<vmem>>) attributes {dimension_semantics = [#tpu.dimension_semantics<parallel>, #tpu.dimension_semantics<parallel>, #tpu.dimension_semantics<arbitrary>], iteration_bounds = array<i64: 2, 1, 1>, scalar_prefetch = 0 : i64, scratch_operands = 0 : i64, tpu.core_type = #tpu.core_type<tc>, window_params = [{transform_indices = @transform_0, window_bounds = array<i64: 1, 4, 4, 4>}, {transform_indices = @transform_1, window_bounds = array<i64: 1, 4, 4, 4>}, {transform_indices = @transform_2, window_bounds = array<i64: 1, 1, 1, 1>}, {transform_indices = @transform_3, window_bounds = array<i64: 1, 1, 1, 1>}]} {
    %cst = arith.constant 0.000000e+00 : f32
    %0 = vector.broadcast %cst : f32 to vector<4x4xf32>
    %cst_0 = arith.constant 0.000000e+00 : f32
    %1 = vector.broadcast %cst_0 : f32 to vector<4x4xf32>
    %cst_1 = arith.constant 0.000000e+00 : f32
    %2 = vector.broadcast %cst_1 : f32 to vector<4x4xf32>
    %cst_2 = arith.constant 0.000000e+00 : f32
    %3 = vector.broadcast %cst_2 : f32 to vector<4x4xf32>
    %cst_3 = arith.constant 0.000000e+00 : f32
    %4 = vector.broadcast %cst_3 : f32 to vector<4x4xf32>
    %cst_4 = arith.constant 0.000000e+00 : f32
    %5 = vector.broadcast %cst_4 : f32 to vector<4x4xf32>
    %c0 = arith.constant 0 : index
    %c0_5 = arith.constant 0 : index
    %c0_6 = arith.constant 0 : index
    %c0_7 = arith.constant 0 : index
    %6 = vector.load %arg3[%c0, %c0_5, %c0_6, %c0_7] : memref<1x4x4x4xf32, #tpu.memory_space<vmem>>, vector<1x1x4x4xf32>
    %7 = vector.shape_cast %6 : vector<1x1x4x4xf32> to vector<4x4xf32>
    %c0_8 = arith.constant 0 : index
    %c0_9 = arith.constant 0 : index
    %c0_10 = arith.constant 0 : index
    %c0_11 = arith.constant 0 : index
    %8 = vector.load %arg4[%c0_8, %c0_9, %c0_10, %c0_11] : memref<1x4x4x4xf32, #tpu.memory_space<vmem>>, vector<1x1x4x4xf32>
    %9 = vector.shape_cast %8 : vector<1x1x4x4xf32> to vector<4x4xf32>
    %10 = arith.subf %9, %7 : vector<4x4xf32>
    %11 = arith.mulf %7, %9 : vector<4x4xf32>
    %12 = arith.addf %2, %11 : vector<4x4xf32>
    %13 = arith.mulf %7, %7 : vector<4x4xf32>
    %14 = arith.addf %3, %13 : vector<4x4xf32>
    %15 = arith.mulf %9, %9 : vector<4x4xf32>
    %16 = arith.addf %4, %15 : vector<4x4xf32>
    %17 = arith.mulf %10, %10 : vector<4x4xf32>
    %18 = arith.addf %5, %17 : vector<4x4xf32>
    %c0_12 = arith.constant 0 : index
    %c1 = arith.constant 1 : index
    %c0_13 = arith.constant 0 : index
    %c0_14 = arith.constant 0 : index
    %19 = vector.load %arg3[%c0_12, %c1, %c0_13, %c0_14] : memref<1x4x4x4xf32, #tpu.memory_space<vmem>>, vector<1x1x4x4xf32>
    %20 = vector.shape_cast %19 : vector<1x1x4x4xf32> to vector<4x4xf32>
    %c0_15 = arith.constant 0 : index
    %c1_16 = arith.constant 1 : index
    %c0_17 = arith.constant 0 : index
    %c0_18 = arith.constant 0 : index
    %21 = vector.load %arg4[%c0_15, %c1_16, %c0_17, %c0_18] : memref<1x4x4x4xf32, #tpu.memory_space<vmem>>, vector<1x1x4x4xf32>
    %22 = vector.shape_cast %21 : vector<1x1x4x4xf32> to vector<4x4xf32>
    %23 = arith.subf %22, %20 : vector<4x4xf32>
    %24 = arith.mulf %20, %22 : vector<4x4xf32>
    %25 = arith.addf %12, %24 : vector<4x4xf32>
    %26 = arith.mulf %20, %20 : vector<4x4xf32>
    %27 = arith.addf %14, %26 : vector<4x4xf32>
    %28 = arith.mulf %22, %22 : vector<4x4xf32>
    %29 = arith.addf %16, %28 : vector<4x4xf32>
    %30 = arith.mulf %23, %23 : vector<4x4xf32>
    %31 = arith.addf %18, %30 : vector<4x4xf32>
    %c0_19 = arith.constant 0 : index
    %c2 = arith.constant 2 : index
    %c0_20 = arith.constant 0 : index
    %c0_21 = arith.constant 0 : index
    %32 = vector.load %arg3[%c0_19, %c2, %c0_20, %c0_21] : memref<1x4x4x4xf32, #tpu.memory_space<vmem>>, vector<1x1x4x4xf32>
    %33 = vector.shape_cast %32 : vector<1x1x4x4xf32> to vector<4x4xf32>
    %c0_22 = arith.constant 0 : index
    %c2_23 = arith.constant 2 : index
    %c0_24 = arith.constant 0 : index
    %c0_25 = arith.constant 0 : index
    %34 = vector.load %arg4[%c0_22, %c2_23, %c0_24, %c0_25] : memref<1x4x4x4xf32, #tpu.memory_space<vmem>>, vector<1x1x4x4xf32>
    %35 = vector.shape_cast %34 : vector<1x1x4x4xf32> to vector<4x4xf32>
    %36 = arith.subf %35, %33 : vector<4x4xf32>
    %37 = arith.mulf %33, %35 : vector<4x4xf32>
    %38 = arith.addf %25, %37 : vector<4x4xf32>
    %39 = arith.mulf %33, %33 : vector<4x4xf32>
    %40 = arith.addf %27, %39 : vector<4x4xf32>
    %41 = arith.mulf %35, %35 : vector<4x4xf32>
    %42 = arith.addf %29, %41 : vector<4x4xf32>
    %43 = arith.mulf %36, %36 : vector<4x4xf32>
    %44 = arith.addf %31, %43 : vector<4x4xf32>
    %c0_26 = arith.constant 0 : index
    %c3 = arith.constant 3 : index
    %c0_27 = arith.constant 0 : index
    %c0_28 = arith.constant 0 : index
    %45 = vector.load %arg3[%c0_26, %c3, %c0_27, %c0_28] : memref<1x4x4x4xf32, #tpu.memory_space<vmem>>, vector<1x1x4x4xf32>
    %46 = vector.shape_cast %45 : vector<1x1x4x4xf32> to vector<4x4xf32>
    %c0_29 = arith.constant 0 : index
    %c3_30 = arith.constant 3 : index
    %c0_31 = arith.constant 0 : index
    %c0_32 = arith.constant 0 : index
    %47 = vector.load %arg4[%c0_29, %c3_30, %c0_31, %c0_32] : memref<1x4x4x4xf32, #tpu.memory_space<vmem>>, vector<1x1x4x4xf32>
    %48 = vector.shape_cast %47 : vector<1x1x4x4xf32> to vector<4x4xf32>
    %49 = arith.subf %48, %46 : vector<4x4xf32>
    %50 = arith.mulf %46, %48 : vector<4x4xf32>
    %51 = arith.addf %38, %50 : vector<4x4xf32>
    %52 = arith.mulf %46, %46 : vector<4x4xf32>
    %53 = arith.addf %40, %52 : vector<4x4xf32>
    %54 = arith.mulf %48, %48 : vector<4x4xf32>
    %55 = arith.addf %42, %54 : vector<4x4xf32>
    %56 = arith.mulf %49, %49 : vector<4x4xf32>
    %57 = arith.addf %44, %56 : vector<4x4xf32>
    %58 = math.sqrt %53 : vector<4x4xf32>
    %cst_33 = arith.constant 9.99999993E-9 : f32
    %59 = vector.broadcast %cst_33 : f32 to vector<4x4xf32>
    %60 = arith.addf %58, %59 : vector<4x4xf32>
    %61 = math.sqrt %55 : vector<4x4xf32>
    %cst_34 = arith.constant 9.99999993E-9 : f32
    %62 = vector.broadcast %cst_34 : f32 to vector<4x4xf32>
    %63 = arith.addf %61, %62 : vector<4x4xf32>
    %64 = arith.mulf %60, %63 : vector<4x4xf32>
    %65 = arith.divf %51, %64 : vector<4x4xf32>
    %cst_35 = arith.constant -1.000000e+00 : f32
    %cst_36 = arith.constant 1.000000e+00 : f32
    %66 = vector.broadcast %cst_35 : f32 to vector<4x4xf32>
    %67 = arith.maximumf %66, %65 : vector<4x4xf32>
    %68 = vector.broadcast %cst_36 : f32 to vector<4x4xf32>
    %69 = arith.minimumf %68, %67 : vector<4x4xf32>
    %70 = math.absf %69 : vector<4x4xf32>
    %cst_37 = arith.constant -0.0012624911 : f32
    %71 = vector.broadcast %cst_37 : f32 to vector<4x4xf32>
    %72 = arith.mulf %71, %70 : vector<4x4xf32>
    %cst_38 = arith.constant 6.670090e-03 : f32
    %73 = vector.broadcast %cst_38 : f32 to vector<4x4xf32>
    %74 = arith.addf %72, %73 : vector<4x4xf32>
    %75 = arith.mulf %74, %70 : vector<4x4xf32>
    %cst_39 = arith.constant -0.0170881264 : f32
    %76 = vector.broadcast %cst_39 : f32 to vector<4x4xf32>
    %77 = arith.addf %75, %76 : vector<4x4xf32>
    %78 = arith.mulf %77, %70 : vector<4x4xf32>
    %cst_40 = arith.constant 0.0308918804 : f32
    %79 = vector.broadcast %cst_40 : f32 to vector<4x4xf32>
    %80 = arith.addf %78, %79 : vector<4x4xf32>
    %81 = arith.mulf %80, %70 : vector<4x4xf32>
    %cst_41 = arith.constant -0.0501743034 : f32
    %82 = vector.broadcast %cst_41 : f32 to vector<4x4xf32>
    %83 = arith.addf %81, %82 : vector<4x4xf32>
    %84 = arith.mulf %83, %70 : vector<4x4xf32>
    %cst_42 = arith.constant 0.0889789909 : f32
    %85 = vector.broadcast %cst_42 : f32 to vector<4x4xf32>
    %86 = arith.addf %84, %85 : vector<4x4xf32>
    %87 = arith.mulf %86, %70 : vector<4x4xf32>
    %cst_43 = arith.constant -0.214598805 : f32
    %88 = vector.broadcast %cst_43 : f32 to vector<4x4xf32>
    %89 = arith.addf %87, %88 : vector<4x4xf32>
    %90 = arith.mulf %89, %70 : vector<4x4xf32>
    %cst_44 = arith.constant 1.57079625 : f32
    %91 = vector.broadcast %cst_44 : f32 to vector<4x4xf32>
    %92 = arith.addf %90, %91 : vector<4x4xf32>
    %cst_45 = arith.constant 1.000000e+00 : f32
    %93 = vector.broadcast %cst_45 : f32 to vector<4x4xf32>
    %94 = arith.subf %93, %70 : vector<4x4xf32>
    %cst_46 = arith.constant 0.000000e+00 : f32
    %95 = vector.broadcast %cst_46 : f32 to vector<4x4xf32>
    %96 = arith.maximumf %94, %95 : vector<4x4xf32>
    %97 = math.sqrt %96 : vector<4x4xf32>
    %98 = arith.mulf %97, %92 : vector<4x4xf32>
    %cst_47 = arith.constant 0.000000e+00 : f32
    %99 = vector.broadcast %cst_47 : f32 to vector<4x4xf32>
    %100 = arith.cmpf oge, %69, %99 : vector<4x4xf32>
    %cst_48 = arith.constant 3.14159274 : f32
    %101 = vector.broadcast %cst_48 : f32 to vector<4x4xf32>
    %102 = arith.subf %101, %98 : vector<4x4xf32>
    %103 = arith.select %100, %98, %102 : vector<4x4xi1>, vector<4x4xf32>
    %104 = arith.addf %1, %103 : vector<4x4xf32>
    %105 = arith.addf %0, %57 : vector<4x4xf32>
    %c0_i32 = arith.constant 0 : i32
    %106 = arith.cmpi eq, %arg2, %c0_i32 : i32
    %107 = arith.extui %106 : i1 to i32
    %c0_i32_49 = arith.constant 0 : i32
    %108 = arith.cmpi ne, %107, %c0_i32_49 : i32
    scf.if %108 {
      %cst_68 = arith.constant 0.000000e+00 : f32
      %131 = vector.broadcast %cst_68 : f32 to vector<1x1xf32>
      %c0_69 = arith.constant 0 : index
      %c0_70 = arith.constant 0 : index
      %c0_71 = arith.constant 0 : index
      %c0_72 = arith.constant 0 : index
      %132 = vector.load %arg5[%c0_69, %c0_70, %c0_71, %c0_72] : memref<1x1x1x1xf32, #tpu.memory_space<vmem>>, vector<1x1x1x1xf32>
      %133 = vector.shape_cast %132 : vector<1x1x1x1xf32> to vector<1x1xf32>
      %134 = vector.shape_cast %131 : vector<1x1xf32> to vector<1x1x1x1xf32>
      tpu.vector_store %arg5[%c0_69, %c0_70, %c0_71, %c0_72], %134 {strides = array<i32>} : memref<1x1x1x1xf32, #tpu.memory_space<vmem>>, vector<1x1x1x1xf32>,
      %cst_73 = arith.constant 0.000000e+00 : f32
      %135 = vector.broadcast %cst_73 : f32 to vector<1x1xf32>
      %c0_74 = arith.constant 0 : index
      %c0_75 = arith.constant 0 : index
      %c0_76 = arith.constant 0 : index
      %c0_77 = arith.constant 0 : index
      %136 = vector.load %arg6[%c0_74, %c0_75, %c0_76, %c0_77] : memref<1x1x1x1xf32, #tpu.memory_space<vmem>>, vector<1x1x1x1xf32>
      %137 = vector.shape_cast %136 : vector<1x1x1x1xf32> to vector<1x1xf32>
      %138 = vector.shape_cast %135 : vector<1x1xf32> to vector<1x1x1x1xf32>
      tpu.vector_store %arg6[%c0_74, %c0_75, %c0_76, %c0_77], %138 {strides = array<i32>} : memref<1x1x1x1xf32, #tpu.memory_space<vmem>>, vector<1x1x1x1xf32>,
    } else {
    }
    %c0_50 = arith.constant 0 : index
    %c0_51 = arith.constant 0 : index
    %c0_52 = arith.constant 0 : index
    %c0_53 = arith.constant 0 : index
    %109 = vector.load %arg5[%c0_50, %c0_51, %c0_52, %c0_53] : memref<1x1x1x1xf32, #tpu.memory_space<vmem>>, vector<1x1x1x1xf32>
    %110 = vector.shape_cast %109 : vector<1x1x1x1xf32> to vector<1x1xf32>
    %111 = vector.shape_cast %105 : vector<4x4xf32> to vector<1x4x4xf32>
    %cst_54 = arith.constant dense<0.000000e+00> : vector<1xf32>
    %112 = vector.multi_reduction <add>, %111, %cst_54 [1, 2] : vector<1x4x4xf32> to vector<1xf32>
    %113 = vector.shape_cast %112 : vector<1xf32> to vector<1x1x1xf32>
    %114 = vector.extract %113[0, 0, 0] : f32 from vector<1x1x1xf32>
    %115 = vector.broadcast %114 : f32 to vector<1x1xf32>
    %116 = arith.addf %110, %115 : vector<1x1xf32>
    %c0_55 = arith.constant 0 : index
    %c0_56 = arith.constant 0 : index
    %c0_57 = arith.constant 0 : index
    %c0_58 = arith.constant 0 : index
    %117 = vector.load %arg5[%c0_55, %c0_56, %c0_57, %c0_58] : memref<1x1x1x1xf32, #tpu.memory_space<vmem>>, vector<1x1x1x1xf32>
    %118 = vector.shape_cast %117 : vector<1x1x1x1xf32> to vector<1x1xf32>
    %119 = vector.shape_cast %116 : vector<1x1xf32> to vector<1x1x1x1xf32>
    tpu.vector_store %arg5[%c0_55, %c0_56, %c0_57, %c0_58], %119 {strides = array<i32>} : memref<1x1x1x1xf32, #tpu.memory_space<vmem>>, vector<1x1x1x1xf32>,
    %c0_59 = arith.constant 0 : index
    %c0_60 = arith.constant 0 : index
    %c0_61 = arith.constant 0 : index
    %c0_62 = arith.constant 0 : index
    %120 = vector.load %arg6[%c0_59, %c0_60, %c0_61, %c0_62] : memref<1x1x1x1xf32, #tpu.memory_space<vmem>>, vector<1x1x1x1xf32>
    %121 = vector.shape_cast %120 : vector<1x1x1x1xf32> to vector<1x1xf32>
    %122 = vector.shape_cast %104 : vector<4x4xf32> to vector<1x4x4xf32>
    %cst_63 = arith.constant dense<0.000000e+00> : vector<1xf32>
    %123 = vector.multi_reduction <add>, %122, %cst_63 [1, 2] : vector<1x4x4xf32> to vector<1xf32>
    %124 = vector.shape_cast %123 : vector<1xf32> to vector<1x1x1xf32>
    %125 = vector.extract %124[0, 0, 0] : f32 from vector<1x1x1xf32>
    %126 = vector.broadcast %125 : f32 to vector<1x1xf32>
    %127 = arith.addf %121, %126 : vector<1x1xf32>
    %c0_64 = arith.constant 0 : index
    %c0_65 = arith.constant 0 : index
    %c0_66 = arith.constant 0 : index
    %c0_67 = arith.constant 0 : index
    %128 = vector.load %arg6[%c0_64, %c0_65, %c0_66, %c0_67] : memref<1x1x1x1xf32, #tpu.memory_space<vmem>>, vector<1x1x1x1xf32>
    %129 = vector.shape_cast %128 : vector<1x1x1x1xf32> to vector<1x1xf32>
    %130 = vector.shape_cast %127 : vector<1x1xf32> to vector<1x1x1x1xf32>
    tpu.vector_store %arg6[%c0_64, %c0_65, %c0_66, %c0_67], %130 {strides = array<i32>} : memref<1x1x1x1xf32, #tpu.memory_space<vmem>>, vector<1x1x1x1xf32>,
    return
  }
  func.func @transform_0(%arg0: i32, %arg1: i32, %arg2: i32) -> (i32, i32, i32, i32) {
    %c0_i32 = arith.constant 0 : i32
    %c0_i32_0 = arith.constant 0 : i32
    return %arg0, %c0_i32, %arg1, %arg2 : i32, i32, i32, i32
  }
  func.func @transform_1(%arg0: i32, %arg1: i32, %arg2: i32) -> (i32, i32, i32, i32) {
    %c0_i32 = arith.constant 0 : i32
    %c0_i32_0 = arith.constant 0 : i32
    return %arg0, %c0_i32, %arg1, %arg2 : i32, i32, i32, i32
  }
  func.func @transform_2(%arg0: i32, %arg1: i32, %arg2: i32) -> (i32, i32, i32, i32) {
    %c0_i32 = arith.constant 0 : i32
    %c0_i32_0 = arith.constant 0 : i32
    %c0_i32_1 = arith.constant 0 : i32
    return %arg0, %arg1, %c0_i32, %c0_i32_0 : i32, i32, i32, i32
  }
  func.func @transform_3(%arg0: i32, %arg1: i32, %arg2: i32) -> (i32, i32, i32, i32) {
    %c0_i32 = arith.constant 0 : i32
    %c0_i32_0 = arith.constant 0 : i32
    %c0_i32_1 = arith.constant 0 : i32
    return %arg0, %arg1, %c0_i32, %c0_i32_0 : i32, i32, i32, i32
  }
}

</mosaic_0001>

<llo_original>
// kernel: a_call__.5
$region0: #{a_call__.5}
  #allocation0 [shape = 'u32[]', space=smem, size = 0x4, offset = 0x4, fixed_abs, tag = 'smem constant byte address 0x4 - core index']
  #allocation1 [shape = 'u32[144,128]{1,0:T(1,128)}', space=vmem, size = 0x12000, scoped, tag = 'internal scratch']
  %s0 = inlined_call_operand.vmem [shape: f32[2,4,4,4], index: 0, kind: input, shape index: {}]
  %s1 = inlined_call_operand.vmem [shape: f32[2,4,4,4], index: 1, kind: input, shape index: {}]
  %s2 = inlined_call_operand.vmem [shape: f32[2,1,1,1], index: 2, kind: output, shape index: {0}]
  %s3 = inlined_call_operand.vmem [shape: f32[2,1,1,1], index: 3, kind: output, shape index: {1}]
  %4 = xla_tuple %s2, %s3
  %s5 = sld [smem:[#allocation0]]
  $region53: #{a_call__.5} parent=0
    _
  %s7 = ssub.s32 1, %s5
  %s8 = scalar_select 0, %s7, %s5
  loop: start=0, step=1, limit=4
  $region2: #{a_call__.5} parent=0 // loop_pre_header
    _
  $region3: #{a_call__.5} parent=0 // loop_header
    %s10 = sphi 0, %s14
    %p11 = scmp.ge.s32.totalorder %s10, 4
    %s17 = sphi 0, %s36
    %s18 = sphi 0, %s32
    %s19 = sphi 0, %s28
    %s20 = sphi 0, %s17
    %s21 = sphi 0, %s18
    %s22 = sphi 0, %s19
    %s23 = sphi 0, %s20
    %s24 = sphi 0, %s21
    %s25 = sphi 0, %s22
    %s43 = sphi 0, %s45
    %s46 = sphi 0, %s43
    %s47 = sphi 0, %s46
    %s63 = sphi 0, %s47
    %s73 = sphi 0, %s75
    %s76 = sphi 0, %s73
    %s77 = sphi 0, %s76
    %s93 = sphi 0, %s77
    %s101 = sphi 0, %s103
    %s104 = sphi 0, %s101
    %s105 = sphi 0, %s104
    %s121 = sphi 0, %s105
    %s129 = sphi 0, %s131
    %s132 = sphi 0, %s129
    %s133 = sphi 0, %s132
    %s149 = sphi 0, %s133
  $region4: #{a_call__.5} parent=0 // loop_header_branch
    %13 = sbr.rel (%p11) target = $region8
  $region5: #{a_call__.5} parent=0 // loop_body
    %s15 = ssub.s32 %s10, 1
    %s16 = ssub.s32 %s10, 2
    %s26 = sadd.s32 1, %s19
    %p27 = scmp.ge.s32.totalorder %s26, 1
    %s28 = scalar_select %p27, 0, %s26
    %s29 = sadd.s32 1, %s18
    %s30 = scalar_select %p27, %s29, %s18
    %p31 = scmp.ge.s32.totalorder %s30, 1
    %s32 = scalar_select %p31, 0, %s30
    %s33 = sadd.s32 1, %s17
    %s34 = scalar_select %p31, %s33, %s17
    %p35 = scmp.ge.s32.totalorder %s34, 2
    %s36 = scalar_select %p35, 0, %s34
    %s37 = ssub.s32 %s17, %s36
    %s38 = ssub.s32 %s18, %s32
    %s39 = sor.u32 %s37, %s38
    %s40 = ssub.s32 %s19, %s28
    %s41 = sor.u32 %s39, %s40
    %p42 = scmp.eq.s32.totalorder %s41, 0
    %s44 = sadd.s32 %s43, 1
    %s45 = scalar_select %p42, %s43, %s44
    %p48 = pneg %p42
    %p49 = scmp.eq.s32.totalorder %s10, 1
    %p50 = por %p48, %p49
    %p51 = scmp.ne.s32.totalorder %s43, %s46
    %p52 = scmp.eq.s32.totalorder %s10, 0
    %p53 = por %p51, %p52
    %p54 = scmp.ne.s32.totalorder %s43, %s46
    %p55 = scmp.eq.s32.totalorder %s15, 1
    %p56 = por %p54, %p55
    %p57 = scmp.ne.s32.totalorder %s46, %s47
    %p58 = scmp.eq.s32.totalorder %s15, 0
    %p59 = por %p57, %p58
    %p60 = scmp.ne.s32.totalorder %s46, %s47
    %p61 = scmp.eq.s32.totalorder %s16, 1
    %p62 = por %p60, %p61
    %p64 = scmp.ne.s32.totalorder %s47, %s63
    %p65 = scmp.eq.s32.totalorder %s16, 0
    %p66 = por %p64, %p65
    %s67 = ssub.s32 %s17, %s36
    %s68 = ssub.s32 %s18, %s32
    %s69 = sor.u32 %s67, %s68
    %s70 = ssub.s32 %s19, %s28
    %s71 = sor.u32 %s69, %s70
    %p72 = scmp.eq.s32.totalorder %s71, 0
    %s74 = sadd.s32 %s73, 1
    %s75 = scalar_select %p72, %s73, %s74
    %p78 = pneg %p72
    %p79 = scmp.eq.s32.totalorder %s10, 1
    %p80 = por %p78, %p79
    %p81 = scmp.ne.s32.totalorder %s73, %s76
    %p82 = scmp.eq.s32.totalorder %s10, 0
    %p83 = por %p81, %p82
    %p84 = scmp.ne.s32.totalorder %s73, %s76
    %p85 = scmp.eq.s32.totalorder %s15, 1
    %p86 = por %p84, %p85
    %p87 = scmp.ne.s32.totalorder %s76, %s77
    %p88 = scmp.eq.s32.totalorder %s15, 0
    %p89 = por %p87, %p88
    %p90 = scmp.ne.s32.totalorder %s76, %s77
    %p91 = scmp.eq.s32.totalorder %s16, 1
    %p92 = por %p90, %p91
    %p94 = scmp.ne.s32.totalorder %s77, %s93
    %p95 = scmp.eq.s32.totalorder %s16, 0
    %p96 = por %p94, %p95
    %s97 = ssub.s32 %s17, %s36
    %s98 = ssub.s32 %s18, %s32
    %s99 = sor.u32 %s97, %s98
    %p100 = scmp.eq.s32.totalorder %s99, 0
    %s102 = sadd.s32 %s101, 1
    %s103 = scalar_select %p100, %s101, %s102
    %p106 = pneg %p100
    %p107 = scmp.eq.s32.totalorder %s10, 1
    %p108 = por %p106, %p107
    %p109 = scmp.ne.s32.totalorder %s101, %s104
    %p110 = scmp.eq.s32.totalorder %s10, 0
    %p111 = por %p109, %p110
    %p112 = scmp.ne.s32.totalorder %s101, %s104
    %p113 = scmp.eq.s32.totalorder %s15, 1
    %p114 = por %p112, %p113
    %p115 = scmp.ne.s32.totalorder %s104, %s105
    %p116 = scmp.eq.s32.totalorder %s15, 0
    %p117 = por %p115, %p116
    %p118 = scmp.ne.s32.totalorder %s104, %s105
    %p119 = scmp.eq.s32.totalorder %s16, 1
    %p120 = por %p118, %p119
    %p122 = scmp.ne.s32.totalorder %s105, %s121
    %p123 = scmp.eq.s32.totalorder %s16, 0
    %p124 = por %p122, %p123
    %s125 = ssub.s32 %s17, %s36
    %s126 = ssub.s32 %s18, %s32
    %s127 = sor.u32 %s125, %s126
    %p128 = scmp.eq.s32.totalorder %s127, 0
    %s130 = sadd.s32 %s129, 1
    %s131 = scalar_select %p128, %s129, %s130
    %p134 = pneg %p128
    %p135 = scmp.eq.s32.totalorder %s10, 1
    %p136 = por %p134, %p135
    %p137 = scmp.ne.s32.totalorder %s129, %s132
    %p138 = scmp.eq.s32.totalorder %s10, 0
    %p139 = por %p137, %p138
    %p140 = scmp.ne.s32.totalorder %s129, %s132
    %p141 = scmp.eq.s32.totalorder %s15, 1
    %p142 = por %p140, %p141
    %p143 = scmp.ne.s32.totalorder %s132, %s133
    %p144 = scmp.eq.s32.totalorder %s15, 0
    %p145 = por %p143, %p144
    %p146 = scmp.ne.s32.totalorder %s132, %s133
    %p147 = scmp.eq.s32.totalorder %s16, 1
    %p148 = por %p146, %p147
    %p150 = scmp.ne.s32.totalorder %s133, %s149
    %p151 = scmp.eq.s32.totalorder %s16, 0
    %p152 = por %p150, %p151
    %p153 = scmp.le.s32.totalorder 1, %s10
    %p154 = scmp.lt.s32.totalorder %s10, 3
    %p155 = pnand %p153, %p154
    %p156 = pneg %p155
    // Predicated region
    $region9: #{a_call__.5} parent=5 // pred_check
      _
    $region10: #{a_call__.5} parent=5 // pred_check_branch
      %158 = sbr.rel (%p155) target = $region12
    $region11: #{a_call__.5} parent=5 // pred_region
      %s159 = ssub.s32 %s10, 1
    $region12: #{a_call__.5} parent=5 // pred_fallthru
      _
    %p160 = scmp.lt.s32.totalorder %s10, 2
    // Predicated region
    $region13: #{a_call__.5} parent=5 // pred_check
      %p161 = pneg %p160
    $region14: #{a_call__.5} parent=5 // pred_check_branch
      %163 = sbr.rel (%p161) target = $region16
    $region15: #{a_call__.5} parent=5 // pred_region
      // Predicated region
      $region17: #{a_call__.5} parent=15 // pred_check
        %p164 = pneg %p53
      $region18: #{a_call__.5} parent=15 // pred_check_branch
        %166 = sbr.rel (%p164) target = $region20
      $region19: #{a_call__.5} parent=15 // pred_region
        %p167 = scmp.lt.s32.totalorder %s17, 1
        %s168 = scalar_select %p167, %s17, 1
        %p169 = scmp.lt.s32.totalorder %s18, 0
        %s170 = scalar_select %p169, %s18, 0
        %p171 = scmp.lt.s32.totalorder %s19, 0
        %s172 = scalar_select %p171, %s19, 0
        %s173 = sadd.s32 %s172, %s170
        %s174 = smul.addr %s168, 4
        %s175 = sadd.s32 %s173, %s174
        %s176 = smul.addr %s175, 4
        %s177 = scalar_lea.vmem %s0, %s176
      $region20: #{a_call__.5} parent=15 // pred_fallthru
        _
      // Predicated region
      $region21: #{a_call__.5} parent=15 // pred_check
        %p178 = pneg %p83
      $region22: #{a_call__.5} parent=15 // pred_check_branch
        %180 = sbr.rel (%p178) target = $region24
      $region23: #{a_call__.5} parent=15 // pred_region
        %p181 = scmp.lt.s32.totalorder %s17, 1
        %s182 = scalar_select %p181, %s17, 1
        %p183 = scmp.lt.s32.totalorder %s18, 0
        %s184 = scalar_select %p183, %s18, 0
        %p185 = scmp.lt.s32.totalorder %s19, 0
        %s186 = scalar_select %p185, %s19, 0
        %s187 = sadd.s32 %s186, %s184
        %s188 = smul.addr %s182, 4
        %s189 = sadd.s32 %s187, %s188
        %s190 = smul.addr %s189, 4
        %s191 = scalar_lea.vmem %s1, %s190
      $region24: #{a_call__.5} parent=15 // pred_fallthru
        _
    $region16: #{a_call__.5} parent=5 // pred_fallthru
      _
    %p192 = scmp.le.s32.totalorder 1, %s10
    %p193 = scmp.lt.s32.totalorder %s10, 3
    %p194 = pnand %p192, %p193
    %p195 = pneg %p194
    // Predicated region
    $region25: #{a_call__.5} parent=5 // pred_check
      _
    $region26: #{a_call__.5} parent=5 // pred_check_branch
      %197 = sbr.rel (%p194) target = $region28
    $region27: #{a_call__.5} parent=5 // pred_region
      %s198 = ssub.s32 %s10, 1
      %p199 = scmp.lt.s32.totalorder %s20, 1
      %s200 = scalar_select %p199, %s20, 1
      %p201 = scmp.lt.s32.totalorder %s21, 0
      %s202 = scalar_select %p201, %s21, 0
      %p203 = scmp.lt.s32.totalorder %s22, 0
      %s204 = scalar_select %p203, %s22, 0
      %s205 = sadd.s32 %s204, %s202
      %s206 = smul.addr %s200, 4
      %s207 = sadd.s32 %s205, %s206
      %s208 = smul.addr %s207, 4
      %s209 = scalar_lea.vmem %s0, %s208
      %p210 = pneg %p59
      %p211 = pneg %p56
      %p212 = scmp.lt.s32.totalorder %s20, 1
      %s213 = scalar_select %p212, %s20, 1
      %p214 = scmp.lt.s32.totalorder %s21, 0
      %s215 = scalar_select %p214, %s21, 0
      %p216 = scmp.lt.s32.totalorder %s22, 0
      %s217 = scalar_select %p216, %s22, 0
      %s218 = sadd.s32 %s217, %s215
      %s219 = smul.addr %s213, 4
      %s220 = sadd.s32 %s218, %s219
      %s221 = smul.addr %s220, 4
      %s222 = scalar_lea.vmem %s1, %s221
      %p223 = pneg %p89
      %p224 = pneg %p86
      %p225 = pneg %p117
      %p226 = pneg %p114
      %p227 = scmp.lt.s32.totalorder %s20, 1
      %s228 = scalar_select %p227, %s20, 1
      %p229 = scmp.lt.s32.totalorder %s21, 0
      %s230 = scalar_select %p229, %s21, 0
      %s231 = sadd.s32 %s230, %s228
      %s232 = scalar_lea.vmem %s2, %s231
      %p233 = pneg %p145
      %p234 = pneg %p142
      %p235 = scmp.lt.s32.totalorder %s20, 1
      %s236 = scalar_select %p235, %s20, 1
      %p237 = scmp.lt.s32.totalorder %s21, 0
      %s238 = scalar_select %p237, %s21, 0
      %s239 = sadd.s32 %s238, %s236
      %s240 = scalar_lea.vmem %s3, %s239
      %p241 = scmp.lt.s32.totalorder %s20, 1
      %s242 = scalar_select %p241, %s20, 1
      %p243 = scmp.lt.s32.totalorder %s21, 0
      %s244 = scalar_select %p243, %s21, 0
      %p245 = scmp.lt.s32.totalorder %s22, 0
      %s246 = scalar_select %p245, %s22, 0
      %s247 = sadd.s32 %s246, %s244
      %s248 = smul.addr %s242, 4
      %s249 = sadd.s32 %s247, %s248
      %s250 = smul.addr %s249, 4
      %s251 = scalar_lea.vmem %s0, %s250
      %p252 = scmp.lt.s32.totalorder %s20, 1
      %s253 = scalar_select %p252, %s20, 1
      %p254 = scmp.lt.s32.totalorder %s21, 0
      %s255 = scalar_select %p254, %s21, 0
      %p256 = scmp.lt.s32.totalorder %s22, 0
      %s257 = scalar_select %p256, %s22, 0
      %s258 = sadd.s32 %s257, %s255
      %s259 = smul.addr %s253, 4
      %s260 = sadd.s32 %s258, %s259
      %s261 = smul.addr %s260, 4
      %s262 = scalar_lea.vmem %s1, %s261
      %p263 = scmp.lt.s32.totalorder %s20, 1
      %s264 = scalar_select %p263, %s20, 1
      %p265 = scmp.lt.s32.totalorder %s21, 0
      %s266 = scalar_select %p265, %s21, 0
      %s267 = sadd.s32 %s266, %s264
      %s268 = scalar_lea.vmem %s2, %s267
      %p269 = scmp.lt.s32.totalorder %s20, 1
      %s270 = scalar_select %p269, %s20, 1
      %p271 = scmp.lt.s32.totalorder %s21, 0
      %s272 = scalar_select %p271, %s21, 0
      %s273 = sadd.s32 %s272, %s270
      %s274 = scalar_lea.vmem %s3, %s273
      %v275 = vld [vmem:[%s251] sm:$0xf]
      %v276 = vld [vmem:[%s262] sm:$0xf]
      %v277 = vsub.f32 %v276, %v275
      %v278 = vmul.f32 %v275, %v276
      %v279 = vadd.f32 %v278, 0.0
      %v280 = vmul.f32 %v275, %v275
      %v281 = vadd.f32 %v280, 0.0
      %v282 = vmul.f32 %v276, %v276
      %v283 = vadd.f32 %v282, 0.0
      %v284 = vmul.f32 %v277, %v277
      %v285 = vadd.f32 %v284, 0.0
      %s286 = scalar_lea.vmem %s251, 4
      %v287 = vld [vmem:[%s286] sm:$0xf]
      %s288 = scalar_lea.vmem %s262, 4
      %v289 = vld [vmem:[%s288] sm:$0xf]
      %v290 = vsub.f32 %v289, %v287
      %v291 = vmul.f32 %v287, %v289
      %v292 = vadd.f32 %v279, %v291
      %v293 = vmul.f32 %v287, %v287
      %v294 = vadd.f32 %v281, %v293
      %v295 = vmul.f32 %v289, %v289
      %v296 = vadd.f32 %v283, %v295
      %v297 = vmul.f32 %v290, %v290
      %v298 = vadd.f32 %v285, %v297
      %s299 = scalar_lea.vmem %s251, 8
      %v300 = vld [vmem:[%s299] sm:$0xf]
      %s301 = scalar_lea.vmem %s262, 8
      %v302 = vld [vmem:[%s301] sm:$0xf]
      %v303 = vsub.f32 %v302, %v300
      %v304 = vmul.f32 %v300, %v302
      %v305 = vadd.f32 %v292, %v304
      %v306 = vmul.f32 %v300, %v300
      %v307 = vadd.f32 %v294, %v306
      %v308 = vmul.f32 %v302, %v302
      %v309 = vadd.f32 %v296, %v308
      %v310 = vmul.f32 %v303, %v303
      %v311 = vadd.f32 %v298, %v310
      %s312 = scalar_lea.vmem %s251, 12
      %v313 = vld [vmem:[%s312] sm:$0xf]
      %s314 = scalar_lea.vmem %s262, 12
      %v315 = vld [vmem:[%s314] sm:$0xf]
      %v316 = vsub.f32 %v315, %v313
      %v317 = vmul.f32 %v313, %v315
      %v318 = vadd.f32 %v305, %v317
      %v319 = vmul.f32 %v313, %v313
      %v320 = vadd.f32 %v307, %v319
      %v321 = vmul.f32 %v315, %v315
      %v322 = vadd.f32 %v309, %v321
      %v323 = vmul.f32 %v316, %v316
      %v324 = vadd.f32 %v311, %v323
      %v325 = vrsqrt.pop %v320
      %v326 = vmul.f32 %v320, %v325
      %vm327 = vcmp.eq.f32.partialorder %v320, inf
      %v328 = vsel %vm327, %v320, %v326
      %vm329 = vcmp.eq.f32.partialorder %v320, 0.0
      %v330 = vand.u32 %v320, 2147483648
      %v331 = vsel %vm329, %v330, %v328
      %v332 = vadd.f32 %v331, 1e-08
      %v333 = vrsqrt.pop %v322
      %v334 = vmul.f32 %v322, %v333
      %vm335 = vcmp.eq.f32.partialorder %v322, inf
      %v336 = vsel %vm335, %v322, %v334
      %vm337 = vcmp.eq.f32.partialorder %v322, 0.0
      %v338 = vand.u32 %v322, 2147483648
      %v339 = vsel %vm337, %v338, %v336
      %v340 = vadd.f32 %v339, 1e-08
      %v341 = vmul.f32 %v332, %v340
      %v342 = vrcp.pop %v341
      %v343 = vmul.f32 %v318, %v342
      %v344 = vmax.f32 %v343, -1.0
      %v345 = vmin.f32 %v344, 1.0
      %v346 = vand.u32 2147483647, %v345
      %v347 = vmul.f32 %v346, -0.0012624911
      %v348 = vadd.f32 %v347, 0.00667009
      %v349 = vmul.f32 %v348, %v346
      %v350 = vadd.f32 %v349, -0.017088126
      %v351 = vmul.f32 %v350, %v346
      %v352 = vadd.f32 %v351, 0.03089188
      %v353 = vmul.f32 %v352, %v346
      %v354 = vadd.f32 %v353, -0.050174303
      %v355 = vmul.f32 %v354, %v346
      %v356 = vadd.f32 %v355, 0.08897899
      %v357 = vmul.f32 %v356, %v346
      %v358 = vadd.f32 %v357, -0.2145988
      %v359 = vmul.f32 %v358, %v346
      %v360 = vadd.f32 %v359, 1.5707963
      %v361 = vsub.f32 1.0, %v346
      %v362 = vmax.f32 %v361, 0.0
      %v363 = vrsqrt.pop %v362
      %v364 = vmul.f32 %v362, %v363
      %vm365 = vcmp.eq.f32.partialorder %v362, inf
      %v366 = vsel %vm365, %v362, %v364
      %vm367 = vcmp.eq.f32.partialorder %v362, 0.0
      %v368 = vand.u32 %v362, 2147483648
      %v369 = vsel %vm367, %v368, %v366
      %v370 = vmul.f32 %v369, %v360
      %vm371 = vcmp.ge.f32.partialorder %v345, 0.0
      %v372 = vsub.f32 3.1415927, %v370
      %v373 = vsel %vm371, %v370, %v372
      %v374 = vadd.f32 %v373, 0.0
      %v375 = vadd.f32 %v324, 0.0
      %p376 = scmp.eq.s32.totalorder %s22, 0
      // Predicated region
      $region29: #{a_call__.5} parent=27 // pred_check
        %p377 = pneg %p376
      $region30: #{a_call__.5} parent=27 // pred_check_branch
        %379 = sbr.rel (%p377) target = $region32
      $region31: #{a_call__.5} parent=27 // pred_region
        %vm380 = vcmask 0
        %381 = vst.msk [vmem:[%s268] sm:$0x1] %vm380, 0.0
        %382 = vst.msk [vmem:[%s274] sm:$0x1] %vm380, 0.0
      $region32: #{a_call__.5} parent=27 // pred_fallthru
        _
      %v383 = vld [vmem:[%s268] sm:$0x1]
      %vm384 = vcmask 27648
      %v385 = vsel %vm384, %v375, 0.0
      %386 = vadd.xlane.f32.xlu0 %v385
      %v387 = vpop.xlane.xlu0 %386
      %v388 = vrot.slane %v387, 4
      %v389 = vadd.f32 %v387, %v388
      %v390 = vrot.slane %v389, 2
      %v391 = vadd.f32 %v389, %v390
      %v392 = vrot.slane %v391, 1
      %v393 = vadd.f32 %v391, %v392
      %s394 = vtos %v393
      %v395 = vstv %s394
      %v396 = vadd.f32 %v383, %v395
      %vm397 = vcmask 0
      %398 = vst.msk [vmem:[%s268] sm:$0x1] %vm397, %v396
      %v399 = vld [vmem:[%s274] sm:$0x1]
      %v400 = vsel %vm384, %v374, 0.0
      %401 = vadd.xlane.f32.xlu0 %v400
      %v402 = vpop.xlane.xlu0 %401
      %v403 = vrot.slane %v402, 4
      %v404 = vadd.f32 %v402, %v403
      %v405 = vrot.slane %v404, 2
      %v406 = vadd.f32 %v404, %v405
      %v407 = vrot.slane %v406, 1
      %v408 = vadd.f32 %v406, %v407
      %s409 = vtos %v408
      %v410 = vstv %s409
      %v411 = vadd.f32 %v399, %v410
      %412 = vst.msk [vmem:[%s274] sm:$0x1] %vm397, %v411
      %p413 = scmp.lt.s32.totalorder %s20, 1
      %s414 = scalar_select %p413, %s20, 1
      %p415 = scmp.lt.s32.totalorder %s21, 0
      %s416 = scalar_select %p415, %s21, 0
      %s417 = sadd.s32 %s416, %s414
      %s418 = scalar_lea.vmem %s2, %s417
      %p419 = scmp.lt.s32.totalorder %s20, 1
      %s420 = scalar_select %p419, %s20, 1
      %p421 = scmp.lt.s32.totalorder %s21, 0
      %s422 = scalar_select %p421, %s21, 0
      %s423 = sadd.s32 %s422, %s420
      %s424 = scalar_lea.vmem %s3, %s423
      // Predicated region
      $region33: #{a_call__.5} parent=27 // pred_check
        %p425 = pneg %p114
      $region34: #{a_call__.5} parent=27 // pred_check_branch
        %427 = sbr.rel (%p425) target = $region36
      $region35: #{a_call__.5} parent=27 // pred_region
        _
      $region36: #{a_call__.5} parent=27 // pred_fallthru
        _
      // Predicated region
      $region37: #{a_call__.5} parent=27 // pred_check
        %p428 = pneg %p142
      $region38: #{a_call__.5} parent=27 // pred_check_branch
        %430 = sbr.rel (%p428) target = $region40
      $region39: #{a_call__.5} parent=27 // pred_region
        _
      $region40: #{a_call__.5} parent=27 // pred_fallthru
        _
    $region28: #{a_call__.5} parent=5 // pred_fallthru
      _
    %p431 = scmp.le.s32.totalorder 2, %s10
    // Predicated region
    $region41: #{a_call__.5} parent=5 // pred_check
      %p432 = pneg %p431
    $region42: #{a_call__.5} parent=5 // pred_check_branch
      %434 = sbr.rel (%p432) target = $region44
    $region43: #{a_call__.5} parent=5 // pred_region
      %s435 = ssub.s32 %s10, 2
      // Predicated region
      $region45: #{a_call__.5} parent=43 // pred_check
        %p436 = pneg %p120
      $region46: #{a_call__.5} parent=43 // pred_check_branch
        %438 = sbr.rel (%p436) target = $region48
      $region47: #{a_call__.5} parent=43 // pred_region
        %p439 = scmp.lt.s32.totalorder %s23, 1
        %s440 = scalar_select %p439, %s23, 1
        %p441 = scmp.lt.s32.totalorder %s24, 0
        %s442 = scalar_select %p441, %s24, 0
        %s443 = sadd.s32 %s442, %s440
        %s444 = scalar_lea.vmem %s2, %s443
      $region48: #{a_call__.5} parent=43 // pred_fallthru
        _
      // Predicated region
      $region49: #{a_call__.5} parent=43 // pred_check
        %p445 = pneg %p148
      $region50: #{a_call__.5} parent=43 // pred_check_branch
        %447 = sbr.rel (%p445) target = $region52
      $region51: #{a_call__.5} parent=43 // pred_region
        %p448 = scmp.lt.s32.totalorder %s23, 1
        %s449 = scalar_select %p448, %s23, 1
        %p450 = scmp.lt.s32.totalorder %s24, 0
        %s451 = scalar_select %p450, %s24, 0
        %s452 = sadd.s32 %s451, %s449
        %s453 = scalar_lea.vmem %s3, %s452
      $region52: #{a_call__.5} parent=43 // pred_fallthru
        _
    $region44: #{a_call__.5} parent=5 // pred_fallthru
      _
  $region6: #{a_call__.5} parent=0 // loop_footer
    %s14 = sadd.s32 1, %s10
  $region7: #{a_call__.5} parent=0 // loop_footer_branch
    %9 = sbr.rel target = $region3
  $region8: #{a_call__.5} parent=0 // loop_exit
    _

// kernel: a_call__.4
$region0: #{a_call__.4}
  #allocation0 [shape = 'u32[]', space=smem, size = 0x4, offset = 0x4, fixed_abs, tag = 'smem constant byte address 0x4 - core index']
  #allocation1 [shape = 'u32[144,128]{1,0:T(1,128)}', space=vmem, size = 0x12000, scoped, tag = 'internal scratch']
  %s0 = inlined_call_operand.vmem [shape: f32[2,4,8,8], index: 0, kind: input, shape index: {}]
  %s1 = inlined_call_operand.vmem [shape: f32[2,4,8,8], index: 1, kind: input, shape index: {}]
  %s2 = inlined_call_operand.vmem [shape: f32[2,1,1,1], index: 2, kind: output, shape index: {0}]
  %s3 = inlined_call_operand.vmem [shape: f32[2,1,1,1], index: 3, kind: output, shape index: {1}]
  %4 = xla_tuple %s2, %s3
  %s5 = sld [smem:[#allocation0]]
  $region53: #{a_call__.4} parent=0
    _
  %s7 = ssub.s32 1, %s5
  %s8 = scalar_select 0, %s7, %s5
  loop: start=0, step=1, limit=4
  $region2: #{a_call__.4} parent=0 // loop_pre_header
    _
  $region3: #{a_call__.4} parent=0 // loop_header
    %s10 = sphi 0, %s14
    %p11 = scmp.ge.s32.totalorder %s10, 4
    %s17 = sphi 0, %s36
    %s18 = sphi 0, %s32
    %s19 = sphi 0, %s28
    %s20 = sphi 0, %s17
    %s21 = sphi 0, %s18
    %s22 = sphi 0, %s19
    %s23 = sphi 0, %s20
    %s24 = sphi 0, %s21
    %s25 = sphi 0, %s22
    %s43 = sphi 0, %s45
    %s46 = sphi 0, %s43
    %s47 = sphi 0, %s46
    %s63 = sphi 0, %s47
    %s73 = sphi 0, %s75
    %s76 = sphi 0, %s73
    %s77 = sphi 0, %s76
    %s93 = sphi 0, %s77
    %s101 = sphi 0, %s103
    %s104 = sphi 0, %s101
    %s105 = sphi 0, %s104
    %s121 = sphi 0, %s105
    %s129 = sphi 0, %s131
    %s132 = sphi 0, %s129
    %s133 = sphi 0, %s132
    %s149 = sphi 0, %s133
  $region4: #{a_call__.4} parent=0 // loop_header_branch
    %13 = sbr.rel (%p11) target = $region8
  $region5: #{a_call__.4} parent=0 // loop_body
    %s15 = ssub.s32 %s10, 1
    %s16 = ssub.s32 %s10, 2
    %s26 = sadd.s32 1, %s19
    %p27 = scmp.ge.s32.totalorder %s26, 1
    %s28 = scalar_select %p27, 0, %s26
    %s29 = sadd.s32 1, %s18
    %s30 = scalar_select %p27, %s29, %s18
    %p31 = scmp.ge.s32.totalorder %s30, 1
    %s32 = scalar_select %p31, 0, %s30
    %s33 = sadd.s32 1, %s17
    %s34 = scalar_select %p31, %s33, %s17
    %p35 = scmp.ge.s32.totalorder %s34, 2
    %s36 = scalar_select %p35, 0, %s34
    %s37 = ssub.s32 %s17, %s36
    %s38 = ssub.s32 %s18, %s32
    %s39 = sor.u32 %s37, %s38
    %s40 = ssub.s32 %s19, %s28
    %s41 = sor.u32 %s39, %s40
    %p42 = scmp.eq.s32.totalorder %s41, 0
    %s44 = sadd.s32 %s43, 1
    %s45 = scalar_select %p42, %s43, %s44
    %p48 = pneg %p42
    %p49 = scmp.eq.s32.totalorder %s10, 1
    %p50 = por %p48, %p49
    %p51 = scmp.ne.s32.totalorder %s43, %s46
    %p52 = scmp.eq.s32.totalorder %s10, 0
    %p53 = por %p51, %p52
    %p54 = scmp.ne.s32.totalorder %s43, %s46
    %p55 = scmp.eq.s32.totalorder %s15, 1
    %p56 = por %p54, %p55
    %p57 = scmp.ne.s32.totalorder %s46, %s47
    %p58 = scmp.eq.s32.totalorder %s15, 0
    %p59 = por %p57, %p58
    %p60 = scmp.ne.s32.totalorder %s46, %s47
    %p61 = scmp.eq.s32.totalorder %s16, 1
    %p62 = por %p60, %p61
    %p64 = scmp.ne.s32.totalorder %s47, %s63
    %p65 = scmp.eq.s32.totalorder %s16, 0
    %p66 = por %p64, %p65
    %s67 = ssub.s32 %s17, %s36
    %s68 = ssub.s32 %s18, %s32
    %s69 = sor.u32 %s67, %s68
    %s70 = ssub.s32 %s19, %s28
    %s71 = sor.u32 %s69, %s70
    %p72 = scmp.eq.s32.totalorder %s71, 0
    %s74 = sadd.s32 %s73, 1
    %s75 = scalar_select %p72, %s73, %s74
    %p78 = pneg %p72
    %p79 = scmp.eq.s32.totalorder %s10, 1
    %p80 = por %p78, %p79
    %p81 = scmp.ne.s32.totalorder %s73, %s76
    %p82 = scmp.eq.s32.totalorder %s10, 0
    %p83 = por %p81, %p82
    %p84 = scmp.ne.s32.totalorder %s73, %s76
    %p85 = scmp.eq.s32.totalorder %s15, 1
    %p86 = por %p84, %p85
    %p87 = scmp.ne.s32.totalorder %s76, %s77
    %p88 = scmp.eq.s32.totalorder %s15, 0
    %p89 = por %p87, %p88
    %p90 = scmp.ne.s32.totalorder %s76, %s77
    %p91 = scmp.eq.s32.totalorder %s16, 1
    %p92 = por %p90, %p91
    %p94 = scmp.ne.s32.totalorder %s77, %s93
    %p95 = scmp.eq.s32.totalorder %s16, 0
    %p96 = por %p94, %p95
    %s97 = ssub.s32 %s17, %s36
    %s98 = ssub.s32 %s18, %s32
    %s99 = sor.u32 %s97, %s98
    %p100 = scmp.eq.s32.totalorder %s99, 0
    %s102 = sadd.s32 %s101, 1
    %s103 = scalar_select %p100, %s101, %s102
    %p106 = pneg %p100
    %p107 = scmp.eq.s32.totalorder %s10, 1
    %p108 = por %p106, %p107
    %p109 = scmp.ne.s32.totalorder %s101, %s104
    %p110 = scmp.eq.s32.totalorder %s10, 0
    %p111 = por %p109, %p110
    %p112 = scmp.ne.s32.totalorder %s101, %s104
    %p113 = scmp.eq.s32.totalorder %s15, 1
    %p114 = por %p112, %p113
    %p115 = scmp.ne.s32.totalorder %s104, %s105
    %p116 = scmp.eq.s32.totalorder %s15, 0
    %p117 = por %p115, %p116
    %p118 = scmp.ne.s32.totalorder %s104, %s105
    %p119 = scmp.eq.s32.totalorder %s16, 1
    %p120 = por %p118, %p119
    %p122 = scmp.ne.s32.totalorder %s105, %s121
    %p123 = scmp.eq.s32.totalorder %s16, 0
    %p124 = por %p122, %p123
    %s125 = ssub.s32 %s17, %s36
    %s126 = ssub.s32 %s18, %s32
    %s127 = sor.u32 %s125, %s126
    %p128 = scmp.eq.s32.totalorder %s127, 0
    %s130 = sadd.s32 %s129, 1
    %s131 = scalar_select %p128, %s129, %s130
    %p134 = pneg %p128
    %p135 = scmp.eq.s32.totalorder %s10, 1
    %p136 = por %p134, %p135
    %p137 = scmp.ne.s32.totalorder %s129, %s132
    %p138 = scmp.eq.s32.totalorder %s10, 0
    %p139 = por %p137, %p138
    %p140 = scmp.ne.s32.totalorder %s129, %s132
    %p141 = scmp.eq.s32.totalorder %s15, 1
    %p142 = por %p140, %p141
    %p143 = scmp.ne.s32.totalorder %s132, %s133
    %p144 = scmp.eq.s32.totalorder %s15, 0
    %p145 = por %p143, %p144
    %p146 = scmp.ne.s32.totalorder %s132, %s133
    %p147 = scmp.eq.s32.totalorder %s16, 1
    %p148 = por %p146, %p147
    %p150 = scmp.ne.s32.totalorder %s133, %s149
    %p151 = scmp.eq.s32.totalorder %s16, 0
    %p152 = por %p150, %p151
    %p153 = scmp.le.s32.totalorder 1, %s10
    %p154 = scmp.lt.s32.totalorder %s10, 3
    %p155 = pnand %p153, %p154
    %p156 = pneg %p155
    // Predicated region
    $region9: #{a_call__.4} parent=5 // pred_check
      _
    $region10: #{a_call__.4} parent=5 // pred_check_branch
      %158 = sbr.rel (%p155) target = $region12
    $region11: #{a_call__.4} parent=5 // pred_region
      %s159 = ssub.s32 %s10, 1
    $region12: #{a_call__.4} parent=5 // pred_fallthru
      _
    %p160 = scmp.lt.s32.totalorder %s10, 2
    // Predicated region
    $region13: #{a_call__.4} parent=5 // pred_check
      %p161 = pneg %p160
    $region14: #{a_call__.4} parent=5 // pred_check_branch
      %163 = sbr.rel (%p161) target = $region16
    $region15: #{a_call__.4} parent=5 // pred_region
      // Predicated region
      $region17: #{a_call__.4} parent=15 // pred_check
        %p164 = pneg %p53
      $region18: #{a_call__.4} parent=15 // pred_check_branch
        %166 = sbr.rel (%p164) target = $region20
      $region19: #{a_call__.4} parent=15 // pred_region
        %p167 = scmp.lt.s32.totalorder %s17, 1
        %s168 = scalar_select %p167, %s17, 1
        %p169 = scmp.lt.s32.totalorder %s18, 0
        %s170 = scalar_select %p169, %s18, 0
        %p171 = scmp.lt.s32.totalorder %s19, 0
        %s172 = scalar_select %p171, %s19, 0
        %s173 = sadd.s32 %s172, %s170
        %s174 = smul.addr %s168, 4
        %s175 = sadd.s32 %s173, %s174
        %s176 = smul.addr %s175, 8
        %s177 = scalar_lea.vmem %s0, %s176
      $region20: #{a_call__.4} parent=15 // pred_fallthru
        _
      // Predicated region
      $region21: #{a_call__.4} parent=15 // pred_check
        %p178 = pneg %p83
      $region22: #{a_call__.4} parent=15 // pred_check_branch
        %180 = sbr.rel (%p178) target = $region24
      $region23: #{a_call__.4} parent=15 // pred_region
        %p181 = scmp.lt.s32.totalorder %s17, 1
        %s182 = scalar_select %p181, %s17, 1
        %p183 = scmp.lt.s32.totalorder %s18, 0
        %s184 = scalar_select %p183, %s18, 0
        %p185 = scmp.lt.s32.totalorder %s19, 0
        %s186 = scalar_select %p185, %s19, 0
        %s187 = sadd.s32 %s186, %s184
        %s188 = smul.addr %s182, 4
        %s189 = sadd.s32 %s187, %s188
        %s190 = smul.addr %s189, 8
        %s191 = scalar_lea.vmem %s1, %s190
      $region24: #{a_call__.4} parent=15 // pred_fallthru
        _
    $region16: #{a_call__.4} parent=5 // pred_fallthru
      _
    %p192 = scmp.le.s32.totalorder 1, %s10
    %p193 = scmp.lt.s32.totalorder %s10, 3
    %p194 = pnand %p192, %p193
    %p195 = pneg %p194
    // Predicated region
    $region25: #{a_call__.4} parent=5 // pred_check
      _
    $region26: #{a_call__.4} parent=5 // pred_check_branch
      %197 = sbr.rel (%p194) target = $region28
    $region27: #{a_call__.4} parent=5 // pred_region
      %s198 = ssub.s32 %s10, 1
      %p199 = scmp.lt.s32.totalorder %s20, 1
      %s200 = scalar_select %p199, %s20, 1
      %p201 = scmp.lt.s32.totalorder %s21, 0
      %s202 = scalar_select %p201, %s21, 0
      %p203 = scmp.lt.s32.totalorder %s22, 0
      %s204 = scalar_select %p203, %s22, 0
      %s205 = sadd.s32 %s204, %s202
      %s206 = smul.addr %s200, 4
      %s207 = sadd.s32 %s205, %s206
      %s208 = smul.addr %s207, 8
      %s209 = scalar_lea.vmem %s0, %s208
      %p210 = pneg %p59
      %p211 = pneg %p56
      %p212 = scmp.lt.s32.totalorder %s20, 1
      %s213 = scalar_select %p212, %s20, 1
      %p214 = scmp.lt.s32.totalorder %s21, 0
      %s215 = scalar_select %p214, %s21, 0
      %p216 = scmp.lt.s32.totalorder %s22, 0
      %s217 = scalar_select %p216, %s22, 0
      %s218 = sadd.s32 %s217, %s215
      %s219 = smul.addr %s213, 4
      %s220 = sadd.s32 %s218, %s219
      %s221 = smul.addr %s220, 8
      %s222 = scalar_lea.vmem %s1, %s221
      %p223 = pneg %p89
      %p224 = pneg %p86
      %p225 = pneg %p117
      %p226 = pneg %p114
      %p227 = scmp.lt.s32.totalorder %s20, 1
      %s228 = scalar_select %p227, %s20, 1
      %p229 = scmp.lt.s32.totalorder %s21, 0
      %s230 = scalar_select %p229, %s21, 0
      %s231 = sadd.s32 %s230, %s228
      %s232 = scalar_lea.vmem %s2, %s231
      %p233 = pneg %p145
      %p234 = pneg %p142
      %p235 = scmp.lt.s32.totalorder %s20, 1
      %s236 = scalar_select %p235, %s20, 1
      %p237 = scmp.lt.s32.totalorder %s21, 0
      %s238 = scalar_select %p237, %s21, 0
      %s239 = sadd.s32 %s238, %s236
      %s240 = scalar_lea.vmem %s3, %s239
      %p241 = scmp.lt.s32.totalorder %s20, 1
      %s242 = scalar_select %p241, %s20, 1
      %p243 = scmp.lt.s32.totalorder %s21, 0
      %s244 = scalar_select %p243, %s21, 0
      %p245 = scmp.lt.s32.totalorder %s22, 0
      %s246 = scalar_select %p245, %s22, 0
      %s247 = sadd.s32 %s246, %s244
      %s248 = smul.addr %s242, 4
      %s249 = sadd.s32 %s247, %s248
      %s250 = smul.addr %s249, 8
      %s251 = scalar_lea.vmem %s0, %s250
      %p252 = scmp.lt.s32.totalorder %s20, 1
      %s253 = scalar_select %p252, %s20, 1
      %p254 = scmp.lt.s32.totalorder %s21, 0
      %s255 = scalar_select %p254, %s21, 0
      %p256 = scmp.lt.s32.totalorder %s22, 0
      %s257 = scalar_select %p256, %s22, 0
      %s258 = sadd.s32 %s257, %s255
      %s259 = smul.addr %s253, 4
      %s260 = sadd.s32 %s258, %s259
      %s261 = smul.addr %s260, 8
      %s262 = scalar_lea.vmem %s1, %s261
      %p263 = scmp.lt.s32.totalorder %s20, 1
      %s264 = scalar_select %p263, %s20, 1
      %p265 = scmp.lt.s32.totalorder %s21, 0
      %s266 = scalar_select %p265, %s21, 0
      %s267 = sadd.s32 %s266, %s264
      %s268 = scalar_lea.vmem %s2, %s267
      %p269 = scmp.lt.s32.totalorder %s20, 1
      %s270 = scalar_select %p269, %s20, 1
      %p271 = scmp.lt.s32.totalorder %s21, 0
      %s272 = scalar_select %p271, %s21, 0
      %s273 = sadd.s32 %s272, %s270
      %s274 = scalar_lea.vmem %s3, %s273
      %v275 = vld [vmem:[%s251] sm:$0xff]
      %v276 = vld [vmem:[%s262] sm:$0xff]
      %v277 = vsub.f32 %v276, %v275
      %v278 = vmul.f32 %v275, %v276
      %v279 = vadd.f32 %v278, 0.0
      %v280 = vmul.f32 %v275, %v275
      %v281 = vadd.f32 %v280, 0.0
      %v282 = vmul.f32 %v276, %v276
      %v283 = vadd.f32 %v282, 0.0
      %v284 = vmul.f32 %v277, %v277
      %v285 = vadd.f32 %v284, 0.0
      %s286 = scalar_lea.vmem %s251, 8
      %v287 = vld [vmem:[%s286] sm:$0xff]
      %s288 = scalar_lea.vmem %s262, 8
      %v289 = vld [vmem:[%s288] sm:$0xff]
      %v290 = vsub.f32 %v289, %v287
      %v291 = vmul.f32 %v287, %v289
      %v292 = vadd.f32 %v279, %v291
      %v293 = vmul.f32 %v287, %v287
      %v294 = vadd.f32 %v281, %v293
      %v295 = vmul.f32 %v289, %v289
      %v296 = vadd.f32 %v283, %v295
      %v297 = vmul.f32 %v290, %v290
      %v298 = vadd.f32 %v285, %v297
      %s299 = scalar_lea.vmem %s251, 16
      %v300 = vld [vmem:[%s299] sm:$0xff]
      %s301 = scalar_lea.vmem %s262, 16
      %v302 = vld [vmem:[%s301] sm:$0xff]
      %v303 = vsub.f32 %v302, %v300
      %v304 = vmul.f32 %v300, %v302
      %v305 = vadd.f32 %v292, %v304
      %v306 = vmul.f32 %v300, %v300
      %v307 = vadd.f32 %v294, %v306
      %v308 = vmul.f32 %v302, %v302
      %v309 = vadd.f32 %v296, %v308
      %v310 = vmul.f32 %v303, %v303
      %v311 = vadd.f32 %v298, %v310
      %s312 = scalar_lea.vmem %s251, 24
      %v313 = vld [vmem:[%s312] sm:$0xff]
      %s314 = scalar_lea.vmem %s262, 24
      %v315 = vld [vmem:[%s314] sm:$0xff]
      %v316 = vsub.f32 %v315, %v313
      %v317 = vmul.f32 %v313, %v315
      %v318 = vadd.f32 %v305, %v317
      %v319 = vmul.f32 %v313, %v313
      %v320 = vadd.f32 %v307, %v319
      %v321 = vmul.f32 %v315, %v315
      %v322 = vadd.f32 %v309, %v321
      %v323 = vmul.f32 %v316, %v316
      %v324 = vadd.f32 %v311, %v323
      %v325 = vrsqrt.pop %v320
      %v326 = vmul.f32 %v320, %v325
      %vm327 = vcmp.eq.f32.partialorder %v320, inf
      %v328 = vsel %vm327, %v320, %v326
      %vm329 = vcmp.eq.f32.partialorder %v320, 0.0
      %v330 = vand.u32 %v320, 2147483648
      %v331 = vsel %vm329, %v330, %v328
      %v332 = vadd.f32 %v331, 1e-08
      %v333 = vrsqrt.pop %v322
      %v334 = vmul.f32 %v322, %v333
      %vm335 = vcmp.eq.f32.partialorder %v322, inf
      %v336 = vsel %vm335, %v322, %v334
      %vm337 = vcmp.eq.f32.partialorder %v322, 0.0
      %v338 = vand.u32 %v322, 2147483648
      %v339 = vsel %vm337, %v338, %v336
      %v340 = vadd.f32 %v339, 1e-08
      %v341 = vmul.f32 %v332, %v340
      %v342 = vrcp.pop %v341
      %v343 = vmul.f32 %v318, %v342
      %v344 = vmax.f32 %v343, -1.0
      %v345 = vmin.f32 %v344, 1.0
      %v346 = vand.u32 2147483647, %v345
      %v347 = vmul.f32 %v346, -0.0012624911
      %v348 = vadd.f32 %v347, 0.00667009
      %v349 = vmul.f32 %v348, %v346
      %v350 = vadd.f32 %v349, -0.017088126
      %v351 = vmul.f32 %v350, %v346
      %v352 = vadd.f32 %v351, 0.03089188
      %v353 = vmul.f32 %v352, %v346
      %v354 = vadd.f32 %v353, -0.050174303
      %v355 = vmul.f32 %v354, %v346
      %v356 = vadd.f32 %v355, 0.08897899
      %v357 = vmul.f32 %v356, %v346
      %v358 = vadd.f32 %v357, -0.2145988
      %v359 = vmul.f32 %v358, %v346
      %v360 = vadd.f32 %v359, 1.5707963
      %v361 = vsub.f32 1.0, %v346
      %v362 = vmax.f32 %v361, 0.0
      %v363 = vrsqrt.pop %v362
      %v364 = vmul.f32 %v362, %v363
      %vm365 = vcmp.eq.f32.partialorder %v362, inf
      %v366 = vsel %vm365, %v362, %v364
      %vm367 = vcmp.eq.f32.partialorder %v362, 0.0
      %v368 = vand.u32 %v362, 2147483648
      %v369 = vsel %vm367, %v368, %v366
      %v370 = vmul.f32 %v369, %v360
      %vm371 = vcmp.ge.f32.partialorder %v345, 0.0
      %v372 = vsub.f32 3.1415927, %v370
      %v373 = vsel %vm371, %v370, %v372
      %v374 = vadd.f32 %v373, 0.0
      %v375 = vadd.f32 %v324, 0.0
      %p376 = scmp.eq.s32.totalorder %s22, 0
      // Predicated region
      $region29: #{a_call__.4} parent=27 // pred_check
        %p377 = pneg %p376
      $region30: #{a_call__.4} parent=27 // pred_check_branch
        %379 = sbr.rel (%p377) target = $region32
      $region31: #{a_call__.4} parent=27 // pred_region
        %vm380 = vcmask 0
        %381 = vst.msk [vmem:[%s268] sm:$0x1] %vm380, 0.0
        %382 = vst.msk [vmem:[%s274] sm:$0x1] %vm380, 0.0
      $region32: #{a_call__.4} parent=27 // pred_fallthru
        _
      %v383 = vld [vmem:[%s268] sm:$0x1]
      %vm384 = vcmask 64512
      %v385 = vsel %vm384, %v375, 0.0
      %386 = vadd.xlane.f32.xlu0 %v385
      %v387 = vpop.xlane.xlu0 %386
      %v388 = vrot.slane %v387, 4
      %v389 = vadd.f32 %v387, %v388
      %v390 = vrot.slane %v389, 2
      %v391 = vadd.f32 %v389, %v390
      %v392 = vrot.slane %v391, 1
      %v393 = vadd.f32 %v391, %v392
      %s394 = vtos %v393
      %v395 = vstv %s394
      %v396 = vadd.f32 %v383, %v395
      %vm397 = vcmask 0
      %398 = vst.msk [vmem:[%s268] sm:$0x1] %vm397, %v396
      %v399 = vld [vmem:[%s274] sm:$0x1]
      %v400 = vsel %vm384, %v374, 0.0
      %401 = vadd.xlane.f32.xlu0 %v400
      %v402 = vpop.xlane.xlu0 %401
      %v403 = vrot.slane %v402, 4
      %v404 = vadd.f32 %v402, %v403
      %v405 = vrot.slane %v404, 2
      %v406 = vadd.f32 %v404, %v405
      %v407 = vrot.slane %v406, 1
      %v408 = vadd.f32 %v406, %v407
      %s409 = vtos %v408
      %v410 = vstv %s409
      %v411 = vadd.f32 %v399, %v410
      %412 = vst.msk [vmem:[%s274] sm:$0x1] %vm397, %v411
      %p413 = scmp.lt.s32.totalorder %s20, 1
      %s414 = scalar_select %p413, %s20, 1
      %p415 = scmp.lt.s32.totalorder %s21, 0
      %s416 = scalar_select %p415, %s21, 0
      %s417 = sadd.s32 %s416, %s414
      %s418 = scalar_lea.vmem %s2, %s417
      %p419 = scmp.lt.s32.totalorder %s20, 1
      %s420 = scalar_select %p419, %s20, 1
      %p421 = scmp.lt.s32.totalorder %s21, 0
      %s422 = scalar_select %p421, %s21, 0
      %s423 = sadd.s32 %s422, %s420
      %s424 = scalar_lea.vmem %s3, %s423
      // Predicated region
      $region33: #{a_call__.4} parent=27 // pred_check
        %p425 = pneg %p114
      $region34: #{a_call__.4} parent=27 // pred_check_branch
        %427 = sbr.rel (%p425) target = $region36
      $region35: #{a_call__.4} parent=27 // pred_region
        _
      $region36: #{a_call__.4} parent=27 // pred_fallthru
        _
      // Predicated region
      $region37: #{a_call__.4} parent=27 // pred_check
        %p428 = pneg %p142
      $region38: #{a_call__.4} parent=27 // pred_check_branch
        %430 = sbr.rel (%p428) target = $region40
      $region39: #{a_call__.4} parent=27 // pred_region
        _
      $region40: #{a_call__.4} parent=27 // pred_fallthru
        _
    $region28: #{a_call__.4} parent=5 // pred_fallthru
      _
    %p431 = scmp.le.s32.totalorder 2, %s10
    // Predicated region
    $region41: #{a_call__.4} parent=5 // pred_check
      %p432 = pneg %p431
    $region42: #{a_call__.4} parent=5 // pred_check_branch
      %434 = sbr.rel (%p432) target = $region44
    $region43: #{a_call__.4} parent=5 // pred_region
      %s435 = ssub.s32 %s10, 2
      // Predicated region
      $region45: #{a_call__.4} parent=43 // pred_check
        %p436 = pneg %p120
      $region46: #{a_call__.4} parent=43 // pred_check_branch
        %438 = sbr.rel (%p436) target = $region48
      $region47: #{a_call__.4} parent=43 // pred_region
        %p439 = scmp.lt.s32.totalorder %s23, 1
        %s440 = scalar_select %p439, %s23, 1
        %p441 = scmp.lt.s32.totalorder %s24, 0
        %s442 = scalar_select %p441, %s24, 0
        %s443 = sadd.s32 %s442, %s440
        %s444 = scalar_lea.vmem %s2, %s443
      $region48: #{a_call__.4} parent=43 // pred_fallthru
        _
      // Predicated region
      $region49: #{a_call__.4} parent=43 // pred_check
        %p445 = pneg %p148
      $region50: #{a_call__.4} parent=43 // pred_check_branch
        %447 = sbr.rel (%p445) target = $region52
      $region51: #{a_call__.4} parent=43 // pred_region
        %p448 = scmp.lt.s32.totalorder %s23, 1
        %s449 = scalar_select %p448, %s23, 1
        %p450 = scmp.lt.s32.totalorder %s24, 0
        %s451 = scalar_select %p450, %s24, 0
        %s452 = sadd.s32 %s451, %s449
        %s453 = scalar_lea.vmem %s3, %s452
      $region52: #{a_call__.4} parent=43 // pred_fallthru
        _
    $region44: #{a_call__.4} parent=5 // pred_fallthru
      _
  $region6: #{a_call__.4} parent=0 // loop_footer
    %s14 = sadd.s32 1, %s10
  $region7: #{a_call__.4} parent=0 // loop_footer_branch
    %9 = sbr.rel target = $region3
  $region8: #{a_call__.4} parent=0 // loop_exit
    _

// kernel: a_call__.3
$region0: #{a_call__.3}
  #allocation0 [shape = 'u32[]', space=smem, size = 0x4, offset = 0x4, fixed_abs, tag = 'smem constant byte address 0x4 - core index']
  #allocation1 [shape = 'u32[144,128]{1,0:T(1,128)}', space=vmem, size = 0x12000, scoped, tag = 'internal scratch']
  %s0 = inlined_call_operand.vmem [shape: f32[2,4,1,256], index: 0, kind: input, shape index: {}]
  %s1 = inlined_call_operand.vmem [shape: f32[2,4,1,256], index: 1, kind: input, shape index: {}]
  %s2 = inlined_call_operand.vmem [shape: f32[2,1,1,1], index: 2, kind: output, shape index: {0}]
  %s3 = inlined_call_operand.vmem [shape: f32[2,1,1,1], index: 3, kind: output, shape index: {1}]
  %4 = xla_tuple %s2, %s3
  %s5 = sld [smem:[#allocation0]]
  $region53: #{a_call__.3} parent=0
    _
  %s7 = ssub.s32 1, %s5
  %s8 = scalar_select 0, %s7, %s5
  loop: start=0, step=1, limit=4
  $region2: #{a_call__.3} parent=0 // loop_pre_header
    _
  $region3: #{a_call__.3} parent=0 // loop_header
    %s10 = sphi 0, %s14
    %p11 = scmp.ge.s32.totalorder %s10, 4
    %s17 = sphi 0, %s36
    %s18 = sphi 0, %s32
    %s19 = sphi 0, %s28
    %s20 = sphi 0, %s17
    %s21 = sphi 0, %s18
    %s22 = sphi 0, %s19
    %s23 = sphi 0, %s20
    %s24 = sphi 0, %s21
    %s25 = sphi 0, %s22
    %s43 = sphi 0, %s45
    %s46 = sphi 0, %s43
    %s47 = sphi 0, %s46
    %s63 = sphi 0, %s47
    %s73 = sphi 0, %s75
    %s76 = sphi 0, %s73
    %s77 = sphi 0, %s76
    %s93 = sphi 0, %s77
    %s101 = sphi 0, %s103
    %s104 = sphi 0, %s101
    %s105 = sphi 0, %s104
    %s121 = sphi 0, %s105
    %s129 = sphi 0, %s131
    %s132 = sphi 0, %s129
    %s133 = sphi 0, %s132
    %s149 = sphi 0, %s133
  $region4: #{a_call__.3} parent=0 // loop_header_branch
    %13 = sbr.rel (%p11) target = $region8
  $region5: #{a_call__.3} parent=0 // loop_body
    %s15 = ssub.s32 %s10, 1
    %s16 = ssub.s32 %s10, 2
    %s26 = sadd.s32 1, %s19
    %p27 = scmp.ge.s32.totalorder %s26, 1
    %s28 = scalar_select %p27, 0, %s26
    %s29 = sadd.s32 1, %s18
    %s30 = scalar_select %p27, %s29, %s18
    %p31 = scmp.ge.s32.totalorder %s30, 1
    %s32 = scalar_select %p31, 0, %s30
    %s33 = sadd.s32 1, %s17
    %s34 = scalar_select %p31, %s33, %s17
    %p35 = scmp.ge.s32.totalorder %s34, 2
    %s36 = scalar_select %p35, 0, %s34
    %s37 = ssub.s32 %s17, %s36
    %s38 = ssub.s32 %s18, %s32
    %s39 = sor.u32 %s37, %s38
    %s40 = ssub.s32 %s19, %s28
    %s41 = sor.u32 %s39, %s40
    %p42 = scmp.eq.s32.totalorder %s41, 0
    %s44 = sadd.s32 %s43, 1
    %s45 = scalar_select %p42, %s43, %s44
    %p48 = pneg %p42
    %p49 = scmp.eq.s32.totalorder %s10, 1
    %p50 = por %p48, %p49
    %p51 = scmp.ne.s32.totalorder %s43, %s46
    %p52 = scmp.eq.s32.totalorder %s10, 0
    %p53 = por %p51, %p52
    %p54 = scmp.ne.s32.totalorder %s43, %s46
    %p55 = scmp.eq.s32.totalorder %s15, 1
    %p56 = por %p54, %p55
    %p57 = scmp.ne.s32.totalorder %s46, %s47
    %p58 = scmp.eq.s32.totalorder %s15, 0
    %p59 = por %p57, %p58
    %p60 = scmp.ne.s32.totalorder %s46, %s47
    %p61 = scmp.eq.s32.totalorder %s16, 1
    %p62 = por %p60, %p61
    %p64 = scmp.ne.s32.totalorder %s47, %s63
    %p65 = scmp.eq.s32.totalorder %s16, 0
    %p66 = por %p64, %p65
    %s67 = ssub.s32 %s17, %s36
    %s68 = ssub.s32 %s18, %s32
    %s69 = sor.u32 %s67, %s68
    %s70 = ssub.s32 %s19, %s28
    %s71 = sor.u32 %s69, %s70
    %p72 = scmp.eq.s32.totalorder %s71, 0
    %s74 = sadd.s32 %s73, 1
    %s75 = scalar_select %p72, %s73, %s74
    %p78 = pneg %p72
    %p79 = scmp.eq.s32.totalorder %s10, 1
    %p80 = por %p78, %p79
    %p81 = scmp.ne.s32.totalorder %s73, %s76
    %p82 = scmp.eq.s32.totalorder %s10, 0
    %p83 = por %p81, %p82
    %p84 = scmp.ne.s32.totalorder %s73, %s76
    %p85 = scmp.eq.s32.totalorder %s15, 1
    %p86 = por %p84, %p85
    %p87 = scmp.ne.s32.totalorder %s76, %s77
    %p88 = scmp.eq.s32.totalorder %s15, 0
    %p89 = por %p87, %p88
    %p90 = scmp.ne.s32.totalorder %s76, %s77
    %p91 = scmp.eq.s32.totalorder %s16, 1
    %p92 = por %p90, %p91
    %p94 = scmp.ne.s32.totalorder %s77, %s93
    %p95 = scmp.eq.s32.totalorder %s16, 0
    %p96 = por %p94, %p95
    %s97 = ssub.s32 %s17, %s36
    %s98 = ssub.s32 %s18, %s32
    %s99 = sor.u32 %s97, %s98
    %p100 = scmp.eq.s32.totalorder %s99, 0
    %s102 = sadd.s32 %s101, 1
    %s103 = scalar_select %p100, %s101, %s102
    %p106 = pneg %p100
    %p107 = scmp.eq.s32.totalorder %s10, 1
    %p108 = por %p106, %p107
    %p109 = scmp.ne.s32.totalorder %s101, %s104
    %p110 = scmp.eq.s32.totalorder %s10, 0
    %p111 = por %p109, %p110
    %p112 = scmp.ne.s32.totalorder %s101, %s104
    %p113 = scmp.eq.s32.totalorder %s15, 1
    %p114 = por %p112, %p113
    %p115 = scmp.ne.s32.totalorder %s104, %s105
    %p116 = scmp.eq.s32.totalorder %s15, 0
    %p117 = por %p115, %p116
    %p118 = scmp.ne.s32.totalorder %s104, %s105
    %p119 = scmp.eq.s32.totalorder %s16, 1
    %p120 = por %p118, %p119
    %p122 = scmp.ne.s32.totalorder %s105, %s121
    %p123 = scmp.eq.s32.totalorder %s16, 0
    %p124 = por %p122, %p123
    %s125 = ssub.s32 %s17, %s36
    %s126 = ssub.s32 %s18, %s32
    %s127 = sor.u32 %s125, %s126
    %p128 = scmp.eq.s32.totalorder %s127, 0
    %s130 = sadd.s32 %s129, 1
    %s131 = scalar_select %p128, %s129, %s130
    %p134 = pneg %p128
    %p135 = scmp.eq.s32.totalorder %s10, 1
    %p136 = por %p134, %p135
    %p137 = scmp.ne.s32.totalorder %s129, %s132
    %p138 = scmp.eq.s32.totalorder %s10, 0
    %p139 = por %p137, %p138
    %p140 = scmp.ne.s32.totalorder %s129, %s132
    %p141 = scmp.eq.s32.totalorder %s15, 1
    %p142 = por %p140, %p141
    %p143 = scmp.ne.s32.totalorder %s132, %s133
    %p144 = scmp.eq.s32.totalorder %s15, 0
    %p145 = por %p143, %p144
    %p146 = scmp.ne.s32.totalorder %s132, %s133
    %p147 = scmp.eq.s32.totalorder %s16, 1
    %p148 = por %p146, %p147
    %p150 = scmp.ne.s32.totalorder %s133, %s149
    %p151 = scmp.eq.s32.totalorder %s16, 0
    %p152 = por %p150, %p151
    %p153 = scmp.le.s32.totalorder 1, %s10
    %p154 = scmp.lt.s32.totalorder %s10, 3
    %p155 = pnand %p153, %p154
    %p156 = pneg %p155
    // Predicated region
    $region9: #{a_call__.3} parent=5 // pred_check
      _
    $region10: #{a_call__.3} parent=5 // pred_check_branch
      %158 = sbr.rel (%p155) target = $region12
    $region11: #{a_call__.3} parent=5 // pred_region
      %s159 = ssub.s32 %s10, 1
    $region12: #{a_call__.3} parent=5 // pred_fallthru
      _
    %p160 = scmp.lt.s32.totalorder %s10, 2
    // Predicated region
    $region13: #{a_call__.3} parent=5 // pred_check
      %p161 = pneg %p160
    $region14: #{a_call__.3} parent=5 // pred_check_branch
      %163 = sbr.rel (%p161) target = $region16
    $region15: #{a_call__.3} parent=5 // pred_region
      // Predicated region
      $region17: #{a_call__.3} parent=15 // pred_check
        %p164 = pneg %p53
      $region18: #{a_call__.3} parent=15 // pred_check_branch
        %166 = sbr.rel (%p164) target = $region20
      $region19: #{a_call__.3} parent=15 // pred_region
        %s167 = smul.u32 2, %s19
        %p168 = scmp.lt.s32.totalorder %s17, 1
        %s169 = scalar_select %p168, %s17, 1
        %p170 = scmp.lt.s32.totalorder %s18, 0
        %s171 = scalar_select %p170, %s18, 0
        %p172 = scmp.lt.s32.totalorder %s167, 1
        %s173 = scalar_select %p172, %s167, 1
        %s174 = smul.addr %s171, 2
        %s175 = sadd.s32 %s173, %s174
        %s176 = smul.addr %s169, 8
        %s177 = sadd.s32 %s175, %s176
        %s178 = scalar_lea.vmem %s0, %s177
        %s179 = smul.u32 2, %s19
      $region20: #{a_call__.3} parent=15 // pred_fallthru
        _
      // Predicated region
      $region21: #{a_call__.3} parent=15 // pred_check
        %p180 = pneg %p83
      $region22: #{a_call__.3} parent=15 // pred_check_branch
        %182 = sbr.rel (%p180) target = $region24
      $region23: #{a_call__.3} parent=15 // pred_region
        %s183 = smul.u32 2, %s19
        %p184 = scmp.lt.s32.totalorder %s17, 1
        %s185 = scalar_select %p184, %s17, 1
        %p186 = scmp.lt.s32.totalorder %s18, 0
        %s187 = scalar_select %p186, %s18, 0
        %p188 = scmp.lt.s32.totalorder %s183, 1
        %s189 = scalar_select %p188, %s183, 1
        %s190 = smul.addr %s187, 2
        %s191 = sadd.s32 %s189, %s190
        %s192 = smul.addr %s185, 8
        %s193 = sadd.s32 %s191, %s192
        %s194 = scalar_lea.vmem %s1, %s193
        %s195 = smul.u32 2, %s19
      $region24: #{a_call__.3} parent=15 // pred_fallthru
        _
    $region16: #{a_call__.3} parent=5 // pred_fallthru
      _
    %p196 = scmp.le.s32.totalorder 1, %s10
    %p197 = scmp.lt.s32.totalorder %s10, 3
    %p198 = pnand %p196, %p197
    %p199 = pneg %p198
    // Predicated region
    $region25: #{a_call__.3} parent=5 // pred_check
      _
    $region26: #{a_call__.3} parent=5 // pred_check_branch
      %201 = sbr.rel (%p198) target = $region28
    $region27: #{a_call__.3} parent=5 // pred_region
      %s202 = ssub.s32 %s10, 1
      %s203 = smul.u32 2, %s22
      %p204 = scmp.lt.s32.totalorder %s20, 1
      %s205 = scalar_select %p204, %s20, 1
      %p206 = scmp.lt.s32.totalorder %s21, 0
      %s207 = scalar_select %p206, %s21, 0
      %p208 = scmp.lt.s32.totalorder %s203, 1
      %s209 = scalar_select %p208, %s203, 1
      %s210 = smul.addr %s207, 2
      %s211 = sadd.s32 %s209, %s210
      %s212 = smul.addr %s205, 8
      %s213 = sadd.s32 %s211, %s212
      %s214 = scalar_lea.vmem %s0, %s213
      %p215 = pneg %p59
      %p216 = pneg %p56
      %s217 = smul.u32 2, %s22
      %p218 = scmp.lt.s32.totalorder %s20, 1
      %s219 = scalar_select %p218, %s20, 1
      %p220 = scmp.lt.s32.totalorder %s21, 0
      %s221 = scalar_select %p220, %s21, 0
      %p222 = scmp.lt.s32.totalorder %s217, 1
      %s223 = scalar_select %p222, %s217, 1
      %s224 = smul.addr %s221, 2
      %s225 = sadd.s32 %s223, %s224
      %s226 = smul.addr %s219, 8
      %s227 = sadd.s32 %s225, %s226
      %s228 = scalar_lea.vmem %s1, %s227
      %p229 = pneg %p89
      %p230 = pneg %p86
      %p231 = pneg %p117
      %p232 = pneg %p114
      %p233 = scmp.lt.s32.totalorder %s20, 1
      %s234 = scalar_select %p233, %s20, 1
      %p235 = scmp.lt.s32.totalorder %s21, 0
      %s236 = scalar_select %p235, %s21, 0
      %s237 = sadd.s32 %s236, %s234
      %s238 = scalar_lea.vmem %s2, %s237
      %p239 = pneg %p145
      %p240 = pneg %p142
      %p241 = scmp.lt.s32.totalorder %s20, 1
      %s242 = scalar_select %p241, %s20, 1
      %p243 = scmp.lt.s32.totalorder %s21, 0
      %s244 = scalar_select %p243, %s21, 0
      %s245 = sadd.s32 %s244, %s242
      %s246 = scalar_lea.vmem %s3, %s245
      %s247 = smul.u32 2, %s22
      %p248 = scmp.lt.s32.totalorder %s20, 1
      %s249 = scalar_select %p248, %s20, 1
      %p250 = scmp.lt.s32.totalorder %s21, 0
      %s251 = scalar_select %p250, %s21, 0
      %p252 = scmp.lt.s32.totalorder %s247, 1
      %s253 = scalar_select %p252, %s247, 1
      %s254 = smul.addr %s251, 2
      %s255 = sadd.s32 %s253, %s254
      %s256 = smul.addr %s249, 8
      %s257 = sadd.s32 %s255, %s256
      %s258 = scalar_lea.vmem %s0, %s257
      %s259 = smul.u32 2, %s22
      %s260 = smul.u32 2, %s22
      %p261 = scmp.lt.s32.totalorder %s20, 1
      %s262 = scalar_select %p261, %s20, 1
      %p263 = scmp.lt.s32.totalorder %s21, 0
      %s264 = scalar_select %p263, %s21, 0
      %p265 = scmp.lt.s32.totalorder %s260, 1
      %s266 = scalar_select %p265, %s260, 1
      %s267 = smul.addr %s264, 2
      %s268 = sadd.s32 %s266, %s267
      %s269 = smul.addr %s262, 8
      %s270 = sadd.s32 %s268, %s269
      %s271 = scalar_lea.vmem %s1, %s270
      %s272 = smul.u32 2, %s22
      %p273 = scmp.lt.s32.totalorder %s20, 1
      %s274 = scalar_select %p273, %s20, 1
      %p275 = scmp.lt.s32.totalorder %s21, 0
      %s276 = scalar_select %p275, %s21, 0
      %s277 = sadd.s32 %s276, %s274
      %s278 = scalar_lea.vmem %s2, %s277
      %p279 = scmp.lt.s32.totalorder %s20, 1
      %s280 = scalar_select %p279, %s20, 1
      %p281 = scmp.lt.s32.totalorder %s21, 0
      %s282 = scalar_select %p281, %s21, 0
      %s283 = sadd.s32 %s282, %s280
      %s284 = scalar_lea.vmem %s3, %s283
      %v285 = vld [vmem:[%s258] sm:$0x3]
      %v286 = vld [vmem:[%s271] sm:$0x3]
      %v287 = vsub.f32 %v286, %v285
      %v288 = vmul.f32 %v285, %v286
      %v289 = vadd.f32 %v288, 0.0
      %v290 = vmul.f32 %v285, %v285
      %v291 = vadd.f32 %v290, 0.0
      %v292 = vmul.f32 %v286, %v286
      %v293 = vadd.f32 %v292, 0.0
      %v294 = vmul.f32 %v287, %v287
      %v295 = vadd.f32 %v294, 0.0
      %s296 = scalar_lea.vmem %s258, 2
      %v297 = vld [vmem:[%s296] sm:$0x3]
      %s298 = scalar_lea.vmem %s271, 2
      %v299 = vld [vmem:[%s298] sm:$0x3]
      %v300 = vsub.f32 %v299, %v297
      %v301 = vmul.f32 %v297, %v299
      %v302 = vadd.f32 %v289, %v301
      %v303 = vmul.f32 %v297, %v297
      %v304 = vadd.f32 %v291, %v303
      %v305 = vmul.f32 %v299, %v299
      %v306 = vadd.f32 %v293, %v305
      %v307 = vmul.f32 %v300, %v300
      %v308 = vadd.f32 %v295, %v307
      %s309 = scalar_lea.vmem %s258, 4
      %v310 = vld [vmem:[%s309] sm:$0x3]
      %s311 = scalar_lea.vmem %s271, 4
      %v312 = vld [vmem:[%s311] sm:$0x3]
      %v313 = vsub.f32 %v312, %v310
      %v314 = vmul.f32 %v310, %v312
      %v315 = vadd.f32 %v302, %v314
      %v316 = vmul.f32 %v310, %v310
      %v317 = vadd.f32 %v304, %v316
      %v318 = vmul.f32 %v312, %v312
      %v319 = vadd.f32 %v306, %v318
      %v320 = vmul.f32 %v313, %v313
      %v321 = vadd.f32 %v308, %v320
      %s322 = scalar_lea.vmem %s258, 6
      %v323 = vld [vmem:[%s322] sm:$0x3]
      %s324 = scalar_lea.vmem %s271, 6
      %v325 = vld [vmem:[%s324] sm:$0x3]
      %v326 = vsub.f32 %v325, %v323
      %v327 = vmul.f32 %v323, %v325
      %v328 = vadd.f32 %v315, %v327
      %v329 = vmul.f32 %v323, %v323
      %v330 = vadd.f32 %v317, %v329
      %v331 = vmul.f32 %v325, %v325
      %v332 = vadd.f32 %v319, %v331
      %v333 = vmul.f32 %v326, %v326
      %v334 = vadd.f32 %v321, %v333
      %v335 = vrsqrt.pop %v330
      %v336 = vmul.f32 %v330, %v335
      %vm337 = vcmp.eq.f32.partialorder %v330, inf
      %v338 = vsel %vm337, %v330, %v336
      %vm339 = vcmp.eq.f32.partialorder %v330, 0.0
      %v340 = vand.u32 %v330, 2147483648
      %v341 = vsel %vm339, %v340, %v338
      %v342 = vadd.f32 %v341, 1e-08
      %v343 = vrsqrt.pop %v332
      %v344 = vmul.f32 %v332, %v343
      %vm345 = vcmp.eq.f32.partialorder %v332, inf
      %v346 = vsel %vm345, %v332, %v344
      %vm347 = vcmp.eq.f32.partialorder %v332, 0.0
      %v348 = vand.u32 %v332, 2147483648
      %v349 = vsel %vm347, %v348, %v346
      %v350 = vadd.f32 %v349, 1e-08
      %v351 = vmul.f32 %v342, %v350
      %v352 = vrcp.pop %v351
      %v353 = vmul.f32 %v328, %v352
      %v354 = vmax.f32 %v353, -1.0
      %v355 = vmin.f32 %v354, 1.0
      %v356 = vand.u32 2147483647, %v355
      %v357 = vmul.f32 %v356, -0.0012624911
      %v358 = vadd.f32 %v357, 0.00667009
      %v359 = vmul.f32 %v358, %v356
      %v360 = vadd.f32 %v359, -0.017088126
      %v361 = vmul.f32 %v360, %v356
      %v362 = vadd.f32 %v361, 0.03089188
      %v363 = vmul.f32 %v362, %v356
      %v364 = vadd.f32 %v363, -0.050174303
      %v365 = vmul.f32 %v364, %v356
      %v366 = vadd.f32 %v365, 0.08897899
      %v367 = vmul.f32 %v366, %v356
      %v368 = vadd.f32 %v367, -0.2145988
      %v369 = vmul.f32 %v368, %v356
      %v370 = vadd.f32 %v369, 1.5707963
      %v371 = vsub.f32 1.0, %v356
      %v372 = vmax.f32 %v371, 0.0
      %v373 = vrsqrt.pop %v372
      %v374 = vmul.f32 %v372, %v373
      %vm375 = vcmp.eq.f32.partialorder %v372, inf
      %v376 = vsel %vm375, %v372, %v374
      %vm377 = vcmp.eq.f32.partialorder %v372, 0.0
      %v378 = vand.u32 %v372, 2147483648
      %v379 = vsel %vm377, %v378, %v376
      %v380 = vmul.f32 %v379, %v370
      %vm381 = vcmp.ge.f32.partialorder %v355, 0.0
      %v382 = vsub.f32 3.1415927, %v380
      %v383 = vsel %vm381, %v380, %v382
      %v384 = vadd.f32 %v383, 0.0
      %v385 = vadd.f32 %v334, 0.0
      %p386 = scmp.eq.s32.totalorder %s22, 0
      // Predicated region
      $region29: #{a_call__.3} parent=27 // pred_check
        %p387 = pneg %p386
      $region30: #{a_call__.3} parent=27 // pred_check_branch
        %389 = sbr.rel (%p387) target = $region32
      $region31: #{a_call__.3} parent=27 // pred_region
        %vm390 = vcmask 0
        %391 = vst.msk [vmem:[%s278] sm:$0x1] %vm390, 0.0
        %392 = vst.msk [vmem:[%s284] sm:$0x1] %vm390, 0.0
      $region32: #{a_call__.3} parent=27 // pred_fallthru
        _
      %v393 = vld [vmem:[%s278] sm:$0x1]
      %v395 = vlaneseq
      %v396 = vshrl.u32 %v395, 7
      %v397 = vsub.s32 0, %v396
      %v398 = vrot.slane %v385, %v397
      %v399 = vlaneseq
      %v400 = vshrl.u32 %v399, 7
      %v401 = vsub.s32 1, %v400
      %v402 = vrot.slane %v385, %v401
      %vm405 = vcmask 1040384
      %v406 = vsel %vm405, %v398, 0.0
      %v407 = vsel %vm405, %v402, 0.0
      %v408 = vadd.f32 %v406, %v407
      %409 = vadd.xlane.f32.xlu0 %v408
      %v410 = vpop.xlane.xlu0 %409
      %v411 = vrot.slane %v410, 4
      %v412 = vadd.f32 %v410, %v411
      %v413 = vrot.slane %v412, 2
      %v414 = vadd.f32 %v412, %v413
      %v415 = vrot.slane %v414, 1
      %v416 = vadd.f32 %v414, %v415
      %s417 = vtos %v416
      %v418 = vstv %s417
      %v419 = vadd.f32 %v393, %v418
      %vm420 = vcmask 0
      %421 = vst.msk [vmem:[%s278] sm:$0x1] %vm420, %v419
      %v422 = vld [vmem:[%s284] sm:$0x1]
      %v424 = vlaneseq
      %v425 = vshrl.u32 %v424, 7
      %v426 = vsub.s32 0, %v425
      %v427 = vrot.slane %v384, %v426
      %v428 = vlaneseq
      %v429 = vshrl.u32 %v428, 7
      %v430 = vsub.s32 1, %v429
      %v431 = vrot.slane %v384, %v430
      %v434 = vsel %vm405, %v427, 0.0
      %v435 = vsel %vm405, %v431, 0.0
      %v436 = vadd.f32 %v434, %v435
      %437 = vadd.xlane.f32.xlu0 %v436
      %v438 = vpop.xlane.xlu0 %437
      %v439 = vrot.slane %v438, 4
      %v440 = vadd.f32 %v438, %v439
      %v441 = vrot.slane %v440, 2
      %v442 = vadd.f32 %v440, %v441
      %v443 = vrot.slane %v442, 1
      %v444 = vadd.f32 %v442, %v443
      %s445 = vtos %v444
      %v446 = vstv %s445
      %v447 = vadd.f32 %v422, %v446
      %448 = vst.msk [vmem:[%s284] sm:$0x1] %vm420, %v447
      %p449 = scmp.lt.s32.totalorder %s20, 1
      %s450 = scalar_select %p449, %s20, 1
      %p451 = scmp.lt.s32.totalorder %s21, 0
      %s452 = scalar_select %p451, %s21, 0
      %s453 = sadd.s32 %s452, %s450
      %s454 = scalar_lea.vmem %s2, %s453
      %p455 = scmp.lt.s32.totalorder %s20, 1
      %s456 = scalar_select %p455, %s20, 1
      %p457 = scmp.lt.s32.totalorder %s21, 0
      %s458 = scalar_select %p457, %s21, 0
      %s459 = sadd.s32 %s458, %s456
      %s460 = scalar_lea.vmem %s3, %s459
      // Predicated region
      $region33: #{a_call__.3} parent=27 // pred_check
        %p461 = pneg %p114
      $region34: #{a_call__.3} parent=27 // pred_check_branch
        %463 = sbr.rel (%p461) target = $region36
      $region35: #{a_call__.3} parent=27 // pred_region
        _
      $region36: #{a_call__.3} parent=27 // pred_fallthru
        _
      // Predicated region
      $region37: #{a_call__.3} parent=27 // pred_check
        %p464 = pneg %p142
      $region38: #{a_call__.3} parent=27 // pred_check_branch
        %466 = sbr.rel (%p464) target = $region40
      $region39: #{a_call__.3} parent=27 // pred_region
        _
      $region40: #{a_call__.3} parent=27 // pred_fallthru
        _
    $region28: #{a_call__.3} parent=5 // pred_fallthru
      _
    %p467 = scmp.le.s32.totalorder 2, %s10
    // Predicated region
    $region41: #{a_call__.3} parent=5 // pred_check
      %p468 = pneg %p467
    $region42: #{a_call__.3} parent=5 // pred_check_branch
      %470 = sbr.rel (%p468) target = $region44
    $region43: #{a_call__.3} parent=5 // pred_region
      %s471 = ssub.s32 %s10, 2
      // Predicated region
      $region45: #{a_call__.3} parent=43 // pred_check
        %p472 = pneg %p120
      $region46: #{a_call__.3} parent=43 // pred_check_branch
        %474 = sbr.rel (%p472) target = $region48
      $region47: #{a_call__.3} parent=43 // pred_region
        %p475 = scmp.lt.s32.totalorder %s23, 1
        %s476 = scalar_select %p475, %s23, 1
        %p477 = scmp.lt.s32.totalorder %s24, 0
        %s478 = scalar_select %p477, %s24, 0
        %s479 = sadd.s32 %s478, %s476
        %s480 = scalar_lea.vmem %s2, %s479
      $region48: #{a_call__.3} parent=43 // pred_fallthru
        _
      // Predicated region
      $region49: #{a_call__.3} parent=43 // pred_check
        %p481 = pneg %p148
      $region50: #{a_call__.3} parent=43 // pred_check_branch
        %483 = sbr.rel (%p481) target = $region52
      $region51: #{a_call__.3} parent=43 // pred_region
        %p484 = scmp.lt.s32.totalorder %s23, 1
        %s485 = scalar_select %p484, %s23, 1
        %p486 = scmp.lt.s32.totalorder %s24, 0
        %s487 = scalar_select %p486, %s24, 0
        %s488 = sadd.s32 %s487, %s485
        %s489 = scalar_lea.vmem %s3, %s488
      $region52: #{a_call__.3} parent=43 // pred_fallthru
        _
    $region44: #{a_call__.3} parent=5 // pred_fallthru
      _
  $region6: #{a_call__.3} parent=0 // loop_footer
    %s14 = sadd.s32 1, %s10
  $region7: #{a_call__.3} parent=0 // loop_footer_branch
    %9 = sbr.rel target = $region3
  $region8: #{a_call__.3} parent=0 // loop_exit
    _

</llo_original>
